<compile_context>
chip_gen: v6e
topology: v6e:2x2x1
jax: 0.10.0
libtpu: 0.0.40
codegen_flags: <defaults>
</compile_context>

<pallas_src>
import jax
import jax.numpy as jnp
from jax.experimental import pallas as pl
from jax.experimental.pallas import tpu as pltpu

# ---- static model configuration (matches LSTNet.__init__) ----
B = 2
SEQ_LEN = 8
PRED_LEN = 4
D_MODEL = 4
C_OUT = 4
HID_R = 128
HID_C = 64
HID_S = 128
KERNEL = 1
SKIP = 2
HW = 2
PT = (SEQ_LEN - KERNEL) // SKIP          # = 3
T0 = SEQ_LEN - PT * SKIP                 # start of the skip window (= 2)
G1 = 3 * HID_R                           # GRU1 gate width inside gi_all
GS = 3 * HID_S                           # GRUskip gate width inside gi_all
ZPAD = 128                               # highway features zero-padded to one lane tile
OUT_W = PRED_LEN * C_OUT

_PREC = jax.lax.Precision.HIGHEST        # used only outside the kernel (folding / reference)


def lstnet_kernel(xc_ref, zf_ref, wgi_ref, bgi_ref,
                  whh1_ref, bhh1_ref, whhs_ref, bhhs_ref,
                  wtail_ref, btail_ref, out_ref):
    f32, bf16 = jnp.float32, jnp.bfloat16

    # --- fused 1x1 conv + input->hidden projections for BOTH GRUs: one matmul,
    #     result kept in registers (16 x 768 f32 = 12 vregs) ---
    gi_all = jnp.dot(xc_ref[...], wgi_ref[...],
                     preferred_element_type=f32) + bgi_ref[...]        # (T*B, G1+GS)

    def gru_step(gi, h, whh_ref, bhh, hid):
        """PyTorch-convention GRU step (gate order r, z, n); gi precomputed off the
        serial path; only h @ whh stays on the recurrence critical path."""
        gh = jnp.dot(h.astype(bf16), whh_ref[...],
                     preferred_element_type=f32) + bhh
        rz = jax.nn.sigmoid(gi[:, :2 * hid] + gh[:, :2 * hid])         # one EUP slab
        r, z = rz[:, :hid], rz[:, hid:]
        n = jnp.tanh(gi[:, 2 * hid:] + r * gh[:, 2 * hid:])
        return (1.0 - z) * n + z * h

    # --- GRU1 over the full sequence; only the final hidden state is used ---
    bhh1 = jnp.broadcast_to(bhh1_ref[...], (B, G1))                    # hoisted broadcast
    h1 = jnp.zeros((B, HID_R), f32)
    for t in range(SEQ_LEN):
        h1 = gru_step(gi_all[t * B:(t + 1) * B, :G1], h1, whh1_ref, bhh1, HID_R)

    # --- GRUskip: the SKIP independent phases stacked into the batch dim
    #     (rows ordered sk*B + b, matching the gi_all time-major row layout) ---
    bhhs = jnp.broadcast_to(bhhs_ref[...], (SKIP * B, GS))             # hoisted broadcast
    hs = jnp.zeros((SKIP * B, HID_S), f32)
    for p in range(PT):
        r0 = (T0 + p * SKIP) * B
        hs = gru_step(gi_all[r0:r0 + SKIP * B, G1:], hs, whhs_ref, bhhs, HID_S)

    # --- fused tail: (linear1∘linear2) + (highway∘linear3) as a single dot ---
    feat = jnp.concatenate([h1, hs[:B], hs[B:], zf_ref[...]], axis=1)  # (B, 512)
    out = jnp.dot(feat.astype(bf16), wtail_ref[...],
                  preferred_element_type=f32) + btail_ref[...]
    out_ref[...] = out.astype(out_ref.dtype)


def fold_params(p):
    """One-time parameter folding/packing. NOT on the per-inference path."""
    f32, bf16 = jnp.float32, jnp.bfloat16

    # 1x1 conv folded into both GRUs' input->hidden projections.
    wih_cat = jnp.concatenate([p['gru1_wih'].T, p['grus_wih'].T], axis=1)   # (hidC, G1+GS)
    bih_cat = jnp.concatenate([p['gru1_bih'], p['grus_bih']])               # (G1+GS,)
    w_gi = jnp.dot(p['conv_w'].T, wih_cat, precision=_PREC)                 # (d_model, G1+GS)
    b_gi = jnp.dot(p['conv_b'], wih_cat, precision=_PREC) + bih_cat

    # linear2(linear1(.)) fused: out[b, p*C+c] = sum_j rcat[b,j]*w1[p,j]*w2[c]
    #                                            + b1[p]*w2[c] + b2[c]
    w1, w2 = p['lin1_w'], p['lin2_w'][:, 0]
    w12 = jnp.einsum('pj,c->jpc', w1, w2).reshape(HID_R + SKIP * HID_S, OUT_W)
    b12 = (p['lin1_b'][:, None] * w2[None, :] + p['lin2_b'][None, :]).reshape(OUT_W)

    # linear3(highway(.)) fused: z3[b, p*C+c] = sum_{k,d} z[b,k,d]*hw_w[p,k]*w3[c,d]
    #                                           + hw_b[p]*sum_d w3[c,d] + b3[c]
    whw3 = jnp.einsum('pk,cd->kdpc', p['hw_w'], p['lin3_w']).reshape(HW * D_MODEL, OUT_W)
    bhw3 = (p['hw_b'][:, None] * jnp.sum(p['lin3_w'], axis=1)[None, :]
            + p['lin3_b'][None, :]).reshape(OUT_W)

    # packed tail weight rows: [0:128] h1, [128:256] skip phase 0, [256:384] phase 1,
    # [384:384+hw*d_model] highway features, remainder zero (lane-tile padding).
    nrz = HID_R + SKIP * HID_S
    w_tail = jnp.zeros((nrz + ZPAD, OUT_W), f32)
    w_tail = w_tail.at[:nrz].set(w12)
    w_tail = w_tail.at[nrz:nrz + HW * D_MODEL].set(whw3)
    b_tail = b12 + bhw3

    return {
        'w_gi': w_gi.astype(f32),
        'b_gi': b_gi[None, :].astype(f32),
        'whh1_t': p['gru1_whh'].T.astype(bf16),
        'bhh1': p['gru1_bhh'][None, :].astype(f32),
        'whhs_t': p['grus_whh'].T.astype(bf16),
        'bhhs': p['grus_bhh'][None, :].astype(f32),
        'w_tail': w_tail.astype(bf16),
        'b_tail': b_tail[None, :].astype(f32),
    }


def lstnet_pallas(x, fp):
    """Per-inference path: input layout plumbing + a single pallas_call."""
    f32 = jnp.float32
    cin = x.reshape(B, D_MODEL, SEQ_LEN)                                    # torch .view semantics
    xc_flat = jnp.transpose(cin, (2, 0, 1)).reshape(SEQ_LEN * B, D_MODEL)   # row t*B + b
    z_flat = x[:, SEQ_LEN - HW:, :].reshape(B, HW * D_MODEL)
    z_pad = jnp.pad(z_flat, ((0, 0), (0, ZPAD - HW * D_MODEL)))             # lane-tile aligned

    args = [xc_flat, z_pad,
            fp['w_gi'], fp['b_gi'],
            fp['whh1_t'], fp['bhh1'], fp['whhs_t'], fp['bhhs'],
            fp['w_tail'], fp['b_tail']]

    vspec = pl.BlockSpec(memory_space=pltpu.MemorySpace.VMEM)
    out_flat = pl.pallas_call(
        lstnet_kernel,
        out_shape=jax.ShapeDtypeStruct((B, OUT_W), f32),
        in_specs=[vspec] * len(args),
        out_specs=vspec,
        cost_estimate=pl.CostEstimate(flops=2_900_000, transcendentals=11_000,
                                      bytes_accessed=250_000),
    )(*args)
    return out_flat.reshape(B, PRED_LEN, C_OUT)


def init_params(key):
    def nrm(k, shape, scale=0.1):
        return scale * jax.random.normal(k, shape, jnp.float32)
    ks = jax.random.split(key, 18)
    return {
        'conv_w': nrm(ks[0], (HID_C, D_MODEL)),        # Conv2d (hidC, d_model, 1, 1) squeezed
        'conv_b': nrm(ks[1], (HID_C,)),
        'gru1_wih': nrm(ks[2], (3 * HID_R, HID_C)),
        'gru1_whh': nrm(ks[3], (3 * HID_R, HID_R)),
        'gru1_bih': nrm(ks[4], (3 * HID_R,)),
        'gru1_bhh': nrm(ks[5], (3 * HID_R,)),
        'grus_wih': nrm(ks[6], (3 * HID_S, HID_C)),
        'grus_whh': nrm(ks[7], (3 * HID_S, HID_S)),
        'grus_bih': nrm(ks[8], (3 * HID_S,)),
        'grus_bhh': nrm(ks[9], (3 * HID_S,)),
        'lin1_w': nrm(ks[10], (PRED_LEN, HID_R + SKIP * HID_S)),
        'lin1_b': nrm(ks[11], (PRED_LEN,)),
        'hw_w': nrm(ks[12], (PRED_LEN, HW)),
        'hw_b': nrm(ks[13], (PRED_LEN,)),
        'lin2_w': nrm(ks[14], (C_OUT, 1)),
        'lin2_b': nrm(ks[15], (C_OUT,)),
        'lin3_w': nrm(ks[16], (C_OUT, D_MODEL)),
        'lin3_b': nrm(ks[17], (C_OUT,)),
    }


def lstnet_ref(x, p):
    """Pure-JAX reference mirroring the PyTorch forward exactly (f32, HIGHEST)."""
    f32 = jnp.float32
    cin = x.reshape(B, D_MODEL, SEQ_LEN)
    c = jnp.einsum('oi,bit->bot', p['conv_w'], cin,
                   precision=_PREC) + p['conv_b'][None, :, None]    # (B, hidC, T)

    def gru_last_hidden(seq, wih, whh, bih, bhh, hid):
        h = jnp.zeros((seq.shape[1], hid), f32)
        for t in range(seq.shape[0]):
            gi = jnp.dot(seq[t], wih.T, precision=_PREC) + bih
            gh = jnp.dot(h, whh.T, precision=_PREC) + bhh
            r = jax.nn.sigmoid(gi[:, :hid] + gh[:, :hid])
            z = jax.nn.sigmoid(gi[:, hid:2 * hid] + gh[:, hid:2 * hid])
            n = jnp.tanh(gi[:, 2 * hid:] + r * gh[:, 2 * hid:])
            h = (1.0 - z) * n + z * h
        return h

    r_seq = jnp.transpose(c, (2, 0, 1))                             # (T, B, hidC)
    r = gru_last_hidden(r_seq, p['gru1_wih'], p['gru1_whh'],
                        p['gru1_bih'], p['gru1_bhh'], HID_R)

    s = c[:, :, SEQ_LEN - PT * SKIP:]
    s = s.reshape(B, HID_C, PT, SKIP)
    s = jnp.transpose(s, (2, 0, 3, 1)).reshape(PT, B * SKIP, HID_C)
    hskip = gru_last_hidden(s, p['grus_wih'], p['grus_whh'],
                            p['grus_bih'], p['grus_bhh'], HID_S)
    s2 = hskip.reshape(B, SKIP * HID_S)

    rcat = jnp.concatenate([r, s2], axis=1)
    res1 = jnp.dot(rcat, p['lin1_w'].T, precision=_PREC) + p['lin1_b']
    res2 = res1[:, :, None] * p['lin2_w'][:, 0][None, None, :] + p['lin2_b'][None, None, :]

    z = x[:, SEQ_LEN - HW:, :]
    zp = jnp.transpose(z, (0, 2, 1))                                # (B, d_model, hw)
    zh = jnp.einsum('bdk,pk->bdp', zp, p['hw_w'],
                    precision=_PREC) + p['hw_b'][None, None, :]
    zt = jnp.transpose(zh, (0, 2, 1))                               # (B, pred_len, d_model)
    z3 = jnp.einsum('bpd,cd->bpc', zt, p['lin3_w'],
                    precision=_PREC) + p['lin3_b'][None, None, :]
    return res2 + z3


if __name__ == "__main__":
    key = jax.random.PRNGKey(0)
    pkey, xkey = jax.random.split(key)
    params = init_params(pkey)
    x = jax.random.normal(xkey, (B, SEQ_LEN, D_MODEL), jnp.float32)

    folded = fold_params(params)                       # one-time, off the inference path
    folded = jax.tree_util.tree_map(jax.block_until_ready, folded)

    out = lstnet_pallas(x, folded)
    out = jax.block_until_ready(out)

    ref = lstnet_ref(x, params)
    assert out.shape == (B, PRED_LEN, C_OUT), out.shape
    if not jnp.allclose(out, ref, atol=2e-2, rtol=2e-2):
        max_err = float(jnp.max(jnp.abs(out - ref)))
        raise AssertionError(f"Pallas output mismatch vs JAX reference (max abs err {max_err})")
    print("KERNEL_OK")
</pallas_src>

<mosaic_0001>
module attributes {stable_mosaic.version = 11 : i64} {
  func.func @lstnet_kernel(%arg0: memref<16x4xf32, #tpu.memory_space<vmem>>, %arg1: memref<2x128xf32, #tpu.memory_space<vmem>>, %arg2: memref<4x768xf32, #tpu.memory_space<vmem>>, %arg3: memref<1x768xf32, #tpu.memory_space<vmem>>, %arg4: memref<128x384xbf16, #tpu.memory_space<vmem>>, %arg5: memref<1x384xf32, #tpu.memory_space<vmem>>, %arg6: memref<128x384xbf16, #tpu.memory_space<vmem>>, %arg7: memref<1x384xf32, #tpu.memory_space<vmem>>, %arg8: memref<512x16xbf16, #tpu.memory_space<vmem>>, %arg9: memref<1x16xf32, #tpu.memory_space<vmem>>, %arg10: memref<2x16xf32, #tpu.memory_space<vmem>>) attributes {dimension_semantics = [], scalar_prefetch = 0 : i64, scratch_operands = 0 : i64, tpu.core_type = #tpu.core_type<tc>} {
    %c0 = arith.constant 0 : index
    %c0_0 = arith.constant 0 : index
    %0 = vector.load %arg0[%c0, %c0_0] : memref<16x4xf32, #tpu.memory_space<vmem>>, vector<16x4xf32>
    %c0_1 = arith.constant 0 : index
    %c0_2 = arith.constant 0 : index
    %1 = vector.load %arg2[%c0_1, %c0_2] : memref<4x768xf32, #tpu.memory_space<vmem>>, vector<4x768xf32>
    %cst = arith.constant dense<0.000000e+00> : vector<16x768xf32>
    %2 = tpu.matmul %0, %1, %cst {dimension_numbers = #tpu.dot_dimension_numbers<[1], [0], [0], [1], [0, 0, 1, 1], [], []>} : vector<16x4xf32>, vector<4x768xf32>, vector<16x768xf32> -> vector<16x768xf32>
    %c0_3 = arith.constant 0 : index
    %c0_4 = arith.constant 0 : index
    %3 = vector.load %arg3[%c0_3, %c0_4] : memref<1x768xf32, #tpu.memory_space<vmem>>, vector<1x768xf32>
    %4 = vector.broadcast %3 : vector<1x768xf32> to vector<16x768xf32>
    %5 = arith.addf %2, %4 : vector<16x768xf32>
    %c0_5 = arith.constant 0 : index
    %c0_6 = arith.constant 0 : index
    %6 = vector.load %arg5[%c0_5, %c0_6] : memref<1x384xf32, #tpu.memory_space<vmem>>, vector<1x384xf32>
    %7 = vector.shape_cast %6 : vector<1x384xf32> to vector<1x384xf32>
    %8 = vector.broadcast %7 : vector<1x384xf32> to vector<2x384xf32>
    %cst_7 = arith.constant 0.000000e+00 : f32
    %9 = vector.broadcast %cst_7 : f32 to vector<2x128xf32>
    %10 = vector.extract_strided_slice %5 {offsets = [0, 0], sizes = [2, 384], strides = [1, 1]} : vector<16x768xf32> to vector<2x384xf32>
    %11 = arith.truncf %9 : vector<2x128xf32> to vector<2x128xbf16>
    %c0_8 = arith.constant 0 : index
    %c0_9 = arith.constant 0 : index
    %12 = vector.load %arg4[%c0_8, %c0_9] : memref<128x384xbf16, #tpu.memory_space<vmem>>, vector<128x384xbf16>
    %cst_10 = arith.constant dense<0.000000e+00> : vector<2x384xf32>
    %13 = tpu.matmul %11, %12, %cst_10 {dimension_numbers = #tpu.dot_dimension_numbers<[1], [0], [0], [1], [0, 0, 1, 1], [], []>} : vector<2x128xbf16>, vector<128x384xbf16>, vector<2x384xf32> -> vector<2x384xf32>
    %14 = arith.addf %13, %8 : vector<2x384xf32>
    %15 = vector.extract_strided_slice %10 {offsets = [0, 0], sizes = [2, 256], strides = [1, 1]} : vector<2x384xf32> to vector<2x256xf32>
    %16 = vector.extract_strided_slice %14 {offsets = [0, 0], sizes = [2, 256], strides = [1, 1]} : vector<2x384xf32> to vector<2x256xf32>
    %17 = arith.addf %15, %16 : vector<2x256xf32>
    %18 = arith.negf %17 : vector<2x256xf32>
    %19 = math.exp %18 : vector<2x256xf32>
    %cst_11 = arith.constant 1.000000e+00 : f32
    %20 = vector.broadcast %cst_11 : f32 to vector<2x256xf32>
    %21 = arith.addf %20, %19 : vector<2x256xf32>
    %22 = arith.divf %20, %21 : vector<2x256xf32>
    %23 = vector.extract_strided_slice %22 {offsets = [0, 0], sizes = [2, 128], strides = [1, 1]} : vector<2x256xf32> to vector<2x128xf32>
    %24 = vector.extract_strided_slice %22 {offsets = [0, 128], sizes = [2, 128], strides = [1, 1]} : vector<2x256xf32> to vector<2x128xf32>
    %25 = vector.extract_strided_slice %10 {offsets = [0, 256], sizes = [2, 128], strides = [1, 1]} : vector<2x384xf32> to vector<2x128xf32>
    %26 = vector.extract_strided_slice %14 {offsets = [0, 256], sizes = [2, 128], strides = [1, 1]} : vector<2x384xf32> to vector<2x128xf32>
    %27 = arith.mulf %23, %26 : vector<2x128xf32>
    %28 = arith.addf %25, %27 : vector<2x128xf32>
    %29 = math.tanh %28 : vector<2x128xf32>
    %cst_12 = arith.constant 1.000000e+00 : f32
    %30 = vector.broadcast %cst_12 : f32 to vector<2x128xf32>
    %31 = arith.subf %30, %24 : vector<2x128xf32>
    %32 = arith.mulf %31, %29 : vector<2x128xf32>
    %33 = arith.mulf %24, %9 : vector<2x128xf32>
    %34 = arith.addf %32, %33 : vector<2x128xf32>
    %35 = vector.extract_strided_slice %5 {offsets = [2, 0], sizes = [2, 384], strides = [1, 1]} : vector<16x768xf32> to vector<2x384xf32>
    %36 = arith.truncf %34 : vector<2x128xf32> to vector<2x128xbf16>
    %c0_13 = arith.constant 0 : index
    %c0_14 = arith.constant 0 : index
    %37 = vector.load %arg4[%c0_13, %c0_14] : memref<128x384xbf16, #tpu.memory_space<vmem>>, vector<128x384xbf16>
    %cst_15 = arith.constant dense<0.000000e+00> : vector<2x384xf32>
    %38 = tpu.matmul %36, %37, %cst_15 {dimension_numbers = #tpu.dot_dimension_numbers<[1], [0], [0], [1], [0, 0, 1, 1], [], []>} : vector<2x128xbf16>, vector<128x384xbf16>, vector<2x384xf32> -> vector<2x384xf32>
    %39 = arith.addf %38, %8 : vector<2x384xf32>
    %40 = vector.extract_strided_slice %35 {offsets = [0, 0], sizes = [2, 256], strides = [1, 1]} : vector<2x384xf32> to vector<2x256xf32>
    %41 = vector.extract_strided_slice %39 {offsets = [0, 0], sizes = [2, 256], strides = [1, 1]} : vector<2x384xf32> to vector<2x256xf32>
    %42 = arith.addf %40, %41 : vector<2x256xf32>
    %43 = arith.negf %42 : vector<2x256xf32>
    %44 = math.exp %43 : vector<2x256xf32>
    %cst_16 = arith.constant 1.000000e+00 : f32
    %45 = vector.broadcast %cst_16 : f32 to vector<2x256xf32>
    %46 = arith.addf %45, %44 : vector<2x256xf32>
    %47 = arith.divf %45, %46 : vector<2x256xf32>
    %48 = vector.extract_strided_slice %47 {offsets = [0, 0], sizes = [2, 128], strides = [1, 1]} : vector<2x256xf32> to vector<2x128xf32>
    %49 = vector.extract_strided_slice %47 {offsets = [0, 128], sizes = [2, 128], strides = [1, 1]} : vector<2x256xf32> to vector<2x128xf32>
    %50 = vector.extract_strided_slice %35 {offsets = [0, 256], sizes = [2, 128], strides = [1, 1]} : vector<2x384xf32> to vector<2x128xf32>
    %51 = vector.extract_strided_slice %39 {offsets = [0, 256], sizes = [2, 128], strides = [1, 1]} : vector<2x384xf32> to vector<2x128xf32>
    %52 = arith.mulf %48, %51 : vector<2x128xf32>
    %53 = arith.addf %50, %52 : vector<2x128xf32>
    %54 = math.tanh %53 : vector<2x128xf32>
    %cst_17 = arith.constant 1.000000e+00 : f32
    %55 = vector.broadcast %cst_17 : f32 to vector<2x128xf32>
    %56 = arith.subf %55, %49 : vector<2x128xf32>
    %57 = arith.mulf %56, %54 : vector<2x128xf32>
    %58 = arith.mulf %49, %34 : vector<2x128xf32>
    %59 = arith.addf %57, %58 : vector<2x128xf32>
    %60 = vector.extract_strided_slice %5 {offsets = [4, 0], sizes = [2, 384], strides = [1, 1]} : vector<16x768xf32> to vector<2x384xf32>
    %61 = arith.truncf %59 : vector<2x128xf32> to vector<2x128xbf16>
    %c0_18 = arith.constant 0 : index
    %c0_19 = arith.constant 0 : index
    %62 = vector.load %arg4[%c0_18, %c0_19] : memref<128x384xbf16, #tpu.memory_space<vmem>>, vector<128x384xbf16>
    %cst_20 = arith.constant dense<0.000000e+00> : vector<2x384xf32>
    %63 = tpu.matmul %61, %62, %cst_20 {dimension_numbers = #tpu.dot_dimension_numbers<[1], [0], [0], [1], [0, 0, 1, 1], [], []>} : vector<2x128xbf16>, vector<128x384xbf16>, vector<2x384xf32> -> vector<2x384xf32>
    %64 = arith.addf %63, %8 : vector<2x384xf32>
    %65 = vector.extract_strided_slice %60 {offsets = [0, 0], sizes = [2, 256], strides = [1, 1]} : vector<2x384xf32> to vector<2x256xf32>
    %66 = vector.extract_strided_slice %64 {offsets = [0, 0], sizes = [2, 256], strides = [1, 1]} : vector<2x384xf32> to vector<2x256xf32>
    %67 = arith.addf %65, %66 : vector<2x256xf32>
    %68 = arith.negf %67 : vector<2x256xf32>
    %69 = math.exp %68 : vector<2x256xf32>
    %cst_21 = arith.constant 1.000000e+00 : f32
    %70 = vector.broadcast %cst_21 : f32 to vector<2x256xf32>
    %71 = arith.addf %70, %69 : vector<2x256xf32>
    %72 = arith.divf %70, %71 : vector<2x256xf32>
    %73 = vector.extract_strided_slice %72 {offsets = [0, 0], sizes = [2, 128], strides = [1, 1]} : vector<2x256xf32> to vector<2x128xf32>
    %74 = vector.extract_strided_slice %72 {offsets = [0, 128], sizes = [2, 128], strides = [1, 1]} : vector<2x256xf32> to vector<2x128xf32>
    %75 = vector.extract_strided_slice %60 {offsets = [0, 256], sizes = [2, 128], strides = [1, 1]} : vector<2x384xf32> to vector<2x128xf32>
    %76 = vector.extract_strided_slice %64 {offsets = [0, 256], sizes = [2, 128], strides = [1, 1]} : vector<2x384xf32> to vector<2x128xf32>
    %77 = arith.mulf %73, %76 : vector<2x128xf32>
    %78 = arith.addf %75, %77 : vector<2x128xf32>
    %79 = math.tanh %78 : vector<2x128xf32>
    %cst_22 = arith.constant 1.000000e+00 : f32
    %80 = vector.broadcast %cst_22 : f32 to vector<2x128xf32>
    %81 = arith.subf %80, %74 : vector<2x128xf32>
    %82 = arith.mulf %81, %79 : vector<2x128xf32>
    %83 = arith.mulf %74, %59 : vector<2x128xf32>
    %84 = arith.addf %82, %83 : vector<2x128xf32>
    %85 = vector.extract_strided_slice %5 {offsets = [6, 0], sizes = [2, 384], strides = [1, 1]} : vector<16x768xf32> to vector<2x384xf32>
    %86 = arith.truncf %84 : vector<2x128xf32> to vector<2x128xbf16>
    %c0_23 = arith.constant 0 : index
    %c0_24 = arith.constant 0 : index
    %87 = vector.load %arg4[%c0_23, %c0_24] : memref<128x384xbf16, #tpu.memory_space<vmem>>, vector<128x384xbf16>
    %cst_25 = arith.constant dense<0.000000e+00> : vector<2x384xf32>
    %88 = tpu.matmul %86, %87, %cst_25 {dimension_numbers = #tpu.dot_dimension_numbers<[1], [0], [0], [1], [0, 0, 1, 1], [], []>} : vector<2x128xbf16>, vector<128x384xbf16>, vector<2x384xf32> -> vector<2x384xf32>
    %89 = arith.addf %88, %8 : vector<2x384xf32>
    %90 = vector.extract_strided_slice %85 {offsets = [0, 0], sizes = [2, 256], strides = [1, 1]} : vector<2x384xf32> to vector<2x256xf32>
    %91 = vector.extract_strided_slice %89 {offsets = [0, 0], sizes = [2, 256], strides = [1, 1]} : vector<2x384xf32> to vector<2x256xf32>
    %92 = arith.addf %90, %91 : vector<2x256xf32>
    %93 = arith.negf %92 : vector<2x256xf32>
    %94 = math.exp %93 : vector<2x256xf32>
    %cst_26 = arith.constant 1.000000e+00 : f32
    %95 = vector.broadcast %cst_26 : f32 to vector<2x256xf32>
    %96 = arith.addf %95, %94 : vector<2x256xf32>
    %97 = arith.divf %95, %96 : vector<2x256xf32>
    %98 = vector.extract_strided_slice %97 {offsets = [0, 0], sizes = [2, 128], strides = [1, 1]} : vector<2x256xf32> to vector<2x128xf32>
    %99 = vector.extract_strided_slice %97 {offsets = [0, 128], sizes = [2, 128], strides = [1, 1]} : vector<2x256xf32> to vector<2x128xf32>
    %100 = vector.extract_strided_slice %85 {offsets = [0, 256], sizes = [2, 128], strides = [1, 1]} : vector<2x384xf32> to vector<2x128xf32>
    %101 = vector.extract_strided_slice %89 {offsets = [0, 256], sizes = [2, 128], strides = [1, 1]} : vector<2x384xf32> to vector<2x128xf32>
    %102 = arith.mulf %98, %101 : vector<2x128xf32>
    %103 = arith.addf %100, %102 : vector<2x128xf32>
    %104 = math.tanh %103 : vector<2x128xf32>
    %cst_27 = arith.constant 1.000000e+00 : f32
    %105 = vector.broadcast %cst_27 : f32 to vector<2x128xf32>
    %106 = arith.subf %105, %99 : vector<2x128xf32>
    %107 = arith.mulf %106, %104 : vector<2x128xf32>
    %108 = arith.mulf %99, %84 : vector<2x128xf32>
    %109 = arith.addf %107, %108 : vector<2x128xf32>
    %110 = vector.extract_strided_slice %5 {offsets = [8, 0], sizes = [2, 384], strides = [1, 1]} : vector<16x768xf32> to vector<2x384xf32>
    %111 = arith.truncf %109 : vector<2x128xf32> to vector<2x128xbf16>
    %c0_28 = arith.constant 0 : index
    %c0_29 = arith.constant 0 : index
    %112 = vector.load %arg4[%c0_28, %c0_29] : memref<128x384xbf16, #tpu.memory_space<vmem>>, vector<128x384xbf16>
    %cst_30 = arith.constant dense<0.000000e+00> : vector<2x384xf32>
    %113 = tpu.matmul %111, %112, %cst_30 {dimension_numbers = #tpu.dot_dimension_numbers<[1], [0], [0], [1], [0, 0, 1, 1], [], []>} : vector<2x128xbf16>, vector<128x384xbf16>, vector<2x384xf32> -> vector<2x384xf32>
    %114 = arith.addf %113, %8 : vector<2x384xf32>
    %115 = vector.extract_strided_slice %110 {offsets = [0, 0], sizes = [2, 256], strides = [1, 1]} : vector<2x384xf32> to vector<2x256xf32>
    %116 = vector.extract_strided_slice %114 {offsets = [0, 0], sizes = [2, 256], strides = [1, 1]} : vector<2x384xf32> to vector<2x256xf32>
    %117 = arith.addf %115, %116 : vector<2x256xf32>
    %118 = arith.negf %117 : vector<2x256xf32>
    %119 = math.exp %118 : vector<2x256xf32>
    %cst_31 = arith.constant 1.000000e+00 : f32
    %120 = vector.broadcast %cst_31 : f32 to vector<2x256xf32>
    %121 = arith.addf %120, %119 : vector<2x256xf32>
    %122 = arith.divf %120, %121 : vector<2x256xf32>
    %123 = vector.extract_strided_slice %122 {offsets = [0, 0], sizes = [2, 128], strides = [1, 1]} : vector<2x256xf32> to vector<2x128xf32>
    %124 = vector.extract_strided_slice %122 {offsets = [0, 128], sizes = [2, 128], strides = [1, 1]} : vector<2x256xf32> to vector<2x128xf32>
    %125 = vector.extract_strided_slice %110 {offsets = [0, 256], sizes = [2, 128], strides = [1, 1]} : vector<2x384xf32> to vector<2x128xf32>
    %126 = vector.extract_strided_slice %114 {offsets = [0, 256], sizes = [2, 128], strides = [1, 1]} : vector<2x384xf32> to vector<2x128xf32>
    %127 = arith.mulf %123, %126 : vector<2x128xf32>
    %128 = arith.addf %125, %127 : vector<2x128xf32>
    %129 = math.tanh %128 : vector<2x128xf32>
    %cst_32 = arith.constant 1.000000e+00 : f32
    %130 = vector.broadcast %cst_32 : f32 to vector<2x128xf32>
    %131 = arith.subf %130, %124 : vector<2x128xf32>
    %132 = arith.mulf %131, %129 : vector<2x128xf32>
    %133 = arith.mulf %124, %109 : vector<2x128xf32>
    %134 = arith.addf %132, %133 : vector<2x128xf32>
    %135 = vector.extract_strided_slice %5 {offsets = [10, 0], sizes = [2, 384], strides = [1, 1]} : vector<16x768xf32> to vector<2x384xf32>
    %136 = arith.truncf %134 : vector<2x128xf32> to vector<2x128xbf16>
    %c0_33 = arith.constant 0 : index
    %c0_34 = arith.constant 0 : index
    %137 = vector.load %arg4[%c0_33, %c0_34] : memref<128x384xbf16, #tpu.memory_space<vmem>>, vector<128x384xbf16>
    %cst_35 = arith.constant dense<0.000000e+00> : vector<2x384xf32>
    %138 = tpu.matmul %136, %137, %cst_35 {dimension_numbers = #tpu.dot_dimension_numbers<[1], [0], [0], [1], [0, 0, 1, 1], [], []>} : vector<2x128xbf16>, vector<128x384xbf16>, vector<2x384xf32> -> vector<2x384xf32>
    %139 = arith.addf %138, %8 : vector<2x384xf32>
    %140 = vector.extract_strided_slice %135 {offsets = [0, 0], sizes = [2, 256], strides = [1, 1]} : vector<2x384xf32> to vector<2x256xf32>
    %141 = vector.extract_strided_slice %139 {offsets = [0, 0], sizes = [2, 256], strides = [1, 1]} : vector<2x384xf32> to vector<2x256xf32>
    %142 = arith.addf %140, %141 : vector<2x256xf32>
    %143 = arith.negf %142 : vector<2x256xf32>
    %144 = math.exp %143 : vector<2x256xf32>
    %cst_36 = arith.constant 1.000000e+00 : f32
    %145 = vector.broadcast %cst_36 : f32 to vector<2x256xf32>
    %146 = arith.addf %145, %144 : vector<2x256xf32>
    %147 = arith.divf %145, %146 : vector<2x256xf32>
    %148 = vector.extract_strided_slice %147 {offsets = [0, 0], sizes = [2, 128], strides = [1, 1]} : vector<2x256xf32> to vector<2x128xf32>
    %149 = vector.extract_strided_slice %147 {offsets = [0, 128], sizes = [2, 128], strides = [1, 1]} : vector<2x256xf32> to vector<2x128xf32>
    %150 = vector.extract_strided_slice %135 {offsets = [0, 256], sizes = [2, 128], strides = [1, 1]} : vector<2x384xf32> to vector<2x128xf32>
    %151 = vector.extract_strided_slice %139 {offsets = [0, 256], sizes = [2, 128], strides = [1, 1]} : vector<2x384xf32> to vector<2x128xf32>
    %152 = arith.mulf %148, %151 : vector<2x128xf32>
    %153 = arith.addf %150, %152 : vector<2x128xf32>
    %154 = math.tanh %153 : vector<2x128xf32>
    %cst_37 = arith.constant 1.000000e+00 : f32
    %155 = vector.broadcast %cst_37 : f32 to vector<2x128xf32>
    %156 = arith.subf %155, %149 : vector<2x128xf32>
    %157 = arith.mulf %156, %154 : vector<2x128xf32>
    %158 = arith.mulf %149, %134 : vector<2x128xf32>
    %159 = arith.addf %157, %158 : vector<2x128xf32>
    %160 = vector.extract_strided_slice %5 {offsets = [12, 0], sizes = [2, 384], strides = [1, 1]} : vector<16x768xf32> to vector<2x384xf32>
    %161 = arith.truncf %159 : vector<2x128xf32> to vector<2x128xbf16>
    %c0_38 = arith.constant 0 : index
    %c0_39 = arith.constant 0 : index
    %162 = vector.load %arg4[%c0_38, %c0_39] : memref<128x384xbf16, #tpu.memory_space<vmem>>, vector<128x384xbf16>
    %cst_40 = arith.constant dense<0.000000e+00> : vector<2x384xf32>
    %163 = tpu.matmul %161, %162, %cst_40 {dimension_numbers = #tpu.dot_dimension_numbers<[1], [0], [0], [1], [0, 0, 1, 1], [], []>} : vector<2x128xbf16>, vector<128x384xbf16>, vector<2x384xf32> -> vector<2x384xf32>
    %164 = arith.addf %163, %8 : vector<2x384xf32>
    %165 = vector.extract_strided_slice %160 {offsets = [0, 0], sizes = [2, 256], strides = [1, 1]} : vector<2x384xf32> to vector<2x256xf32>
    %166 = vector.extract_strided_slice %164 {offsets = [0, 0], sizes = [2, 256], strides = [1, 1]} : vector<2x384xf32> to vector<2x256xf32>
    %167 = arith.addf %165, %166 : vector<2x256xf32>
    %168 = arith.negf %167 : vector<2x256xf32>
    %169 = math.exp %168 : vector<2x256xf32>
    %cst_41 = arith.constant 1.000000e+00 : f32
    %170 = vector.broadcast %cst_41 : f32 to vector<2x256xf32>
    %171 = arith.addf %170, %169 : vector<2x256xf32>
    %172 = arith.divf %170, %171 : vector<2x256xf32>
    %173 = vector.extract_strided_slice %172 {offsets = [0, 0], sizes = [2, 128], strides = [1, 1]} : vector<2x256xf32> to vector<2x128xf32>
    %174 = vector.extract_strided_slice %172 {offsets = [0, 128], sizes = [2, 128], strides = [1, 1]} : vector<2x256xf32> to vector<2x128xf32>
    %175 = vector.extract_strided_slice %160 {offsets = [0, 256], sizes = [2, 128], strides = [1, 1]} : vector<2x384xf32> to vector<2x128xf32>
    %176 = vector.extract_strided_slice %164 {offsets = [0, 256], sizes = [2, 128], strides = [1, 1]} : vector<2x384xf32> to vector<2x128xf32>
    %177 = arith.mulf %173, %176 : vector<2x128xf32>
    %178 = arith.addf %175, %177 : vector<2x128xf32>
    %179 = math.tanh %178 : vector<2x128xf32>
    %cst_42 = arith.constant 1.000000e+00 : f32
    %180 = vector.broadcast %cst_42 : f32 to vector<2x128xf32>
    %181 = arith.subf %180, %174 : vector<2x128xf32>
    %182 = arith.mulf %181, %179 : vector<2x128xf32>
    %183 = arith.mulf %174, %159 : vector<2x128xf32>
    %184 = arith.addf %182, %183 : vector<2x128xf32>
    %185 = vector.extract_strided_slice %5 {offsets = [14, 0], sizes = [2, 384], strides = [1, 1]} : vector<16x768xf32> to vector<2x384xf32>
    %186 = arith.truncf %184 : vector<2x128xf32> to vector<2x128xbf16>
    %c0_43 = arith.constant 0 : index
    %c0_44 = arith.constant 0 : index
    %187 = vector.load %arg4[%c0_43, %c0_44] : memref<128x384xbf16, #tpu.memory_space<vmem>>, vector<128x384xbf16>
    %cst_45 = arith.constant dense<0.000000e+00> : vector<2x384xf32>
    %188 = tpu.matmul %186, %187, %cst_45 {dimension_numbers = #tpu.dot_dimension_numbers<[1], [0], [0], [1], [0, 0, 1, 1], [], []>} : vector<2x128xbf16>, vector<128x384xbf16>, vector<2x384xf32> -> vector<2x384xf32>
    %189 = arith.addf %188, %8 : vector<2x384xf32>
    %190 = vector.extract_strided_slice %185 {offsets = [0, 0], sizes = [2, 256], strides = [1, 1]} : vector<2x384xf32> to vector<2x256xf32>
    %191 = vector.extract_strided_slice %189 {offsets = [0, 0], sizes = [2, 256], strides = [1, 1]} : vector<2x384xf32> to vector<2x256xf32>
    %192 = arith.addf %190, %191 : vector<2x256xf32>
    %193 = arith.negf %192 : vector<2x256xf32>
    %194 = math.exp %193 : vector<2x256xf32>
    %cst_46 = arith.constant 1.000000e+00 : f32
    %195 = vector.broadcast %cst_46 : f32 to vector<2x256xf32>
    %196 = arith.addf %195, %194 : vector<2x256xf32>
    %197 = arith.divf %195, %196 : vector<2x256xf32>
    %198 = vector.extract_strided_slice %197 {offsets = [0, 0], sizes = [2, 128], strides = [1, 1]} : vector<2x256xf32> to vector<2x128xf32>
    %199 = vector.extract_strided_slice %197 {offsets = [0, 128], sizes = [2, 128], strides = [1, 1]} : vector<2x256xf32> to vector<2x128xf32>
    %200 = vector.extract_strided_slice %185 {offsets = [0, 256], sizes = [2, 128], strides = [1, 1]} : vector<2x384xf32> to vector<2x128xf32>
    %201 = vector.extract_strided_slice %189 {offsets = [0, 256], sizes = [2, 128], strides = [1, 1]} : vector<2x384xf32> to vector<2x128xf32>
    %202 = arith.mulf %198, %201 : vector<2x128xf32>
    %203 = arith.addf %200, %202 : vector<2x128xf32>
    %204 = math.tanh %203 : vector<2x128xf32>
    %cst_47 = arith.constant 1.000000e+00 : f32
    %205 = vector.broadcast %cst_47 : f32 to vector<2x128xf32>
    %206 = arith.subf %205, %199 : vector<2x128xf32>
    %207 = arith.mulf %206, %204 : vector<2x128xf32>
    %208 = arith.mulf %199, %184 : vector<2x128xf32>
    %209 = arith.addf %207, %208 : vector<2x128xf32>
    %c0_48 = arith.constant 0 : index
    %c0_49 = arith.constant 0 : index
    %210 = vector.load %arg7[%c0_48, %c0_49] : memref<1x384xf32, #tpu.memory_space<vmem>>, vector<1x384xf32>
    %211 = vector.shape_cast %210 : vector<1x384xf32> to vector<1x384xf32>
    %212 = vector.broadcast %211 : vector<1x384xf32> to vector<4x384xf32>
    %cst_50 = arith.constant 0.000000e+00 : f32
    %213 = vector.broadcast %cst_50 : f32 to vector<4x128xf32>
    %214 = vector.extract_strided_slice %5 {offsets = [4, 384], sizes = [4, 384], strides = [1, 1]} : vector<16x768xf32> to vector<4x384xf32>
    %215 = arith.truncf %213 : vector<4x128xf32> to vector<4x128xbf16>
    %c0_51 = arith.constant 0 : index
    %c0_52 = arith.constant 0 : index
    %216 = vector.load %arg6[%c0_51, %c0_52] : memref<128x384xbf16, #tpu.memory_space<vmem>>, vector<128x384xbf16>
    %cst_53 = arith.constant dense<0.000000e+00> : vector<4x384xf32>
    %217 = tpu.matmul %215, %216, %cst_53 {dimension_numbers = #tpu.dot_dimension_numbers<[1], [0], [0], [1], [0, 0, 1, 1], [], []>} : vector<4x128xbf16>, vector<128x384xbf16>, vector<4x384xf32> -> vector<4x384xf32>
    %218 = arith.addf %217, %212 : vector<4x384xf32>
    %219 = vector.extract_strided_slice %214 {offsets = [0, 0], sizes = [4, 256], strides = [1, 1]} : vector<4x384xf32> to vector<4x256xf32>
    %220 = vector.extract_strided_slice %218 {offsets = [0, 0], sizes = [4, 256], strides = [1, 1]} : vector<4x384xf32> to vector<4x256xf32>
    %221 = arith.addf %219, %220 : vector<4x256xf32>
    %222 = arith.negf %221 : vector<4x256xf32>
    %223 = math.exp %222 : vector<4x256xf32>
    %cst_54 = arith.constant 1.000000e+00 : f32
    %224 = vector.broadcast %cst_54 : f32 to vector<4x256xf32>
    %225 = arith.addf %224, %223 : vector<4x256xf32>
    %226 = arith.divf %224, %225 : vector<4x256xf32>
    %227 = vector.extract_strided_slice %226 {offsets = [0, 0], sizes = [4, 128], strides = [1, 1]} : vector<4x256xf32> to vector<4x128xf32>
    %228 = vector.extract_strided_slice %226 {offsets = [0, 128], sizes = [4, 128], strides = [1, 1]} : vector<4x256xf32> to vector<4x128xf32>
    %229 = vector.extract_strided_slice %214 {offsets = [0, 256], sizes = [4, 128], strides = [1, 1]} : vector<4x384xf32> to vector<4x128xf32>
    %230 = vector.extract_strided_slice %218 {offsets = [0, 256], sizes = [4, 128], strides = [1, 1]} : vector<4x384xf32> to vector<4x128xf32>
    %231 = arith.mulf %227, %230 : vector<4x128xf32>
    %232 = arith.addf %229, %231 : vector<4x128xf32>
    %233 = math.tanh %232 : vector<4x128xf32>
    %cst_55 = arith.constant 1.000000e+00 : f32
    %234 = vector.broadcast %cst_55 : f32 to vector<4x128xf32>
    %235 = arith.subf %234, %228 : vector<4x128xf32>
    %236 = arith.mulf %235, %233 : vector<4x128xf32>
    %237 = arith.mulf %228, %213 : vector<4x128xf32>
    %238 = arith.addf %236, %237 : vector<4x128xf32>
    %239 = vector.extract_strided_slice %5 {offsets = [8, 384], sizes = [4, 384], strides = [1, 1]} : vector<16x768xf32> to vector<4x384xf32>
    %240 = arith.truncf %238 : vector<4x128xf32> to vector<4x128xbf16>
    %c0_56 = arith.constant 0 : index
    %c0_57 = arith.constant 0 : index
    %241 = vector.load %arg6[%c0_56, %c0_57] : memref<128x384xbf16, #tpu.memory_space<vmem>>, vector<128x384xbf16>
    %cst_58 = arith.constant dense<0.000000e+00> : vector<4x384xf32>
    %242 = tpu.matmul %240, %241, %cst_58 {dimension_numbers = #tpu.dot_dimension_numbers<[1], [0], [0], [1], [0, 0, 1, 1], [], []>} : vector<4x128xbf16>, vector<128x384xbf16>, vector<4x384xf32> -> vector<4x384xf32>
    %243 = arith.addf %242, %212 : vector<4x384xf32>
    %244 = vector.extract_strided_slice %239 {offsets = [0, 0], sizes = [4, 256], strides = [1, 1]} : vector<4x384xf32> to vector<4x256xf32>
    %245 = vector.extract_strided_slice %243 {offsets = [0, 0], sizes = [4, 256], strides = [1, 1]} : vector<4x384xf32> to vector<4x256xf32>
    %246 = arith.addf %244, %245 : vector<4x256xf32>
    %247 = arith.negf %246 : vector<4x256xf32>
    %248 = math.exp %247 : vector<4x256xf32>
    %cst_59 = arith.constant 1.000000e+00 : f32
    %249 = vector.broadcast %cst_59 : f32 to vector<4x256xf32>
    %250 = arith.addf %249, %248 : vector<4x256xf32>
    %251 = arith.divf %249, %250 : vector<4x256xf32>
    %252 = vector.extract_strided_slice %251 {offsets = [0, 0], sizes = [4, 128], strides = [1, 1]} : vector<4x256xf32> to vector<4x128xf32>
    %253 = vector.extract_strided_slice %251 {offsets = [0, 128], sizes = [4, 128], strides = [1, 1]} : vector<4x256xf32> to vector<4x128xf32>
    %254 = vector.extract_strided_slice %239 {offsets = [0, 256], sizes = [4, 128], strides = [1, 1]} : vector<4x384xf32> to vector<4x128xf32>
    %255 = vector.extract_strided_slice %243 {offsets = [0, 256], sizes = [4, 128], strides = [1, 1]} : vector<4x384xf32> to vector<4x128xf32>
    %256 = arith.mulf %252, %255 : vector<4x128xf32>
    %257 = arith.addf %254, %256 : vector<4x128xf32>
    %258 = math.tanh %257 : vector<4x128xf32>
    %cst_60 = arith.constant 1.000000e+00 : f32
    %259 = vector.broadcast %cst_60 : f32 to vector<4x128xf32>
    %260 = arith.subf %259, %253 : vector<4x128xf32>
    %261 = arith.mulf %260, %258 : vector<4x128xf32>
    %262 = arith.mulf %253, %238 : vector<4x128xf32>
    %263 = arith.addf %261, %262 : vector<4x128xf32>
    %264 = vector.extract_strided_slice %5 {offsets = [12, 384], sizes = [4, 384], strides = [1, 1]} : vector<16x768xf32> to vector<4x384xf32>
    %265 = arith.truncf %263 : vector<4x128xf32> to vector<4x128xbf16>
    %c0_61 = arith.constant 0 : index
    %c0_62 = arith.constant 0 : index
    %266 = vector.load %arg6[%c0_61, %c0_62] : memref<128x384xbf16, #tpu.memory_space<vmem>>, vector<128x384xbf16>
    %cst_63 = arith.constant dense<0.000000e+00> : vector<4x384xf32>
    %267 = tpu.matmul %265, %266, %cst_63 {dimension_numbers = #tpu.dot_dimension_numbers<[1], [0], [0], [1], [0, 0, 1, 1], [], []>} : vector<4x128xbf16>, vector<128x384xbf16>, vector<4x384xf32> -> vector<4x384xf32>
    %268 = arith.addf %267, %212 : vector<4x384xf32>
    %269 = vector.extract_strided_slice %264 {offsets = [0, 0], sizes = [4, 256], strides = [1, 1]} : vector<4x384xf32> to vector<4x256xf32>
    %270 = vector.extract_strided_slice %268 {offsets = [0, 0], sizes = [4, 256], strides = [1, 1]} : vector<4x384xf32> to vector<4x256xf32>
    %271 = arith.addf %269, %270 : vector<4x256xf32>
    %272 = arith.negf %271 : vector<4x256xf32>
    %273 = math.exp %272 : vector<4x256xf32>
    %cst_64 = arith.constant 1.000000e+00 : f32
    %274 = vector.broadcast %cst_64 : f32 to vector<4x256xf32>
    %275 = arith.addf %274, %273 : vector<4x256xf32>
    %276 = arith.divf %274, %275 : vector<4x256xf32>
    %277 = vector.extract_strided_slice %276 {offsets = [0, 0], sizes = [4, 128], strides = [1, 1]} : vector<4x256xf32> to vector<4x128xf32>
    %278 = vector.extract_strided_slice %276 {offsets = [0, 128], sizes = [4, 128], strides = [1, 1]} : vector<4x256xf32> to vector<4x128xf32>
    %279 = vector.extract_strided_slice %264 {offsets = [0, 256], sizes = [4, 128], strides = [1, 1]} : vector<4x384xf32> to vector<4x128xf32>
    %280 = vector.extract_strided_slice %268 {offsets = [0, 256], sizes = [4, 128], strides = [1, 1]} : vector<4x384xf32> to vector<4x128xf32>
    %281 = arith.mulf %277, %280 : vector<4x128xf32>
    %282 = arith.addf %279, %281 : vector<4x128xf32>
    %283 = math.tanh %282 : vector<4x128xf32>
    %cst_65 = arith.constant 1.000000e+00 : f32
    %284 = vector.broadcast %cst_65 : f32 to vector<4x128xf32>
    %285 = arith.subf %284, %278 : vector<4x128xf32>
    %286 = arith.mulf %285, %283 : vector<4x128xf32>
    %287 = arith.mulf %278, %263 : vector<4x128xf32>
    %288 = arith.addf %286, %287 : vector<4x128xf32>
    %289 = vector.extract_strided_slice %288 {offsets = [0, 0], sizes = [2, 128], strides = [1, 1]} : vector<4x128xf32> to vector<2x128xf32>
    %290 = vector.extract_strided_slice %288 {offsets = [2, 0], sizes = [2, 128], strides = [1, 1]} : vector<4x128xf32> to vector<2x128xf32>
    %c0_66 = arith.constant 0 : index
    %c0_67 = arith.constant 0 : index
    %291 = vector.load %arg1[%c0_66, %c0_67] : memref<2x128xf32, #tpu.memory_space<vmem>>, vector<2x128xf32>
    %292 = tpu.concatenate %209, %289, %290, %291 in 1 : vector<2x128xf32>, vector<2x128xf32>, vector<2x128xf32>, vector<2x128xf32> -> vector<2x512xf32>
    %293 = arith.truncf %292 : vector<2x512xf32> to vector<2x512xbf16>
    %c0_68 = arith.constant 0 : index
    %c0_69 = arith.constant 0 : index
    %294 = vector.load %arg8[%c0_68, %c0_69] : memref<512x16xbf16, #tpu.memory_space<vmem>>, vector<512x16xbf16>
    %cst_70 = arith.constant dense<0.000000e+00> : vector<2x16xf32>
    %295 = tpu.matmul %293, %294, %cst_70 {dimension_numbers = #tpu.dot_dimension_numbers<[1], [0], [0], [1], [0, 0, 1, 1], [], []>} : vector<2x512xbf16>, vector<512x16xbf16>, vector<2x16xf32> -> vector<2x16xf32>
    %c0_71 = arith.constant 0 : index
    %c0_72 = arith.constant 0 : index
    %296 = vector.load %arg9[%c0_71, %c0_72] : memref<1x16xf32, #tpu.memory_space<vmem>>, vector<1x16xf32>
    %297 = vector.broadcast %296 : vector<1x16xf32> to vector<2x16xf32>
    %298 = arith.addf %295, %297 : vector<2x16xf32>
    %c0_73 = arith.constant 0 : index
    %c0_74 = arith.constant 0 : index
    %299 = vector.load %arg10[%c0_73, %c0_74] : memref<2x16xf32, #tpu.memory_space<vmem>>, vector<2x16xf32>
    tpu.vector_store %arg10[%c0_73, %c0_74], %298 {strides = array<i32>} : memref<2x16xf32, #tpu.memory_space<vmem>>, vector<2x16xf32>,
    return
  }
}

</mosaic_0001>

<llo_original>
// kernel: tpu_custom_call.1
$region0: #{tpu_custom_call.1}
  #allocation0 [shape = 'u32[]', space=smem, size = 0x4, offset = 0x4, fixed_abs, tag = 'smem constant byte address 0x4 - core index']
  #allocation1 [shape = 'u32[144,128]{1,0:T(1,128)}', space=vmem, size = 0x12000, scoped, tag = 'internal scratch']
  %s0 = inlined_call_operand.vmem [shape: f32[16,4], index: 0, kind: input, shape index: {}]
  %s1 = inlined_call_operand.vmem [shape: f32[2,128], index: 1, kind: input, shape index: {}]
  %s2 = inlined_call_operand.vmem [shape: f32[4,768], index: 2, kind: input, shape index: {}]
  %s3 = inlined_call_operand.vmem [shape: f32[1,768], index: 3, kind: input, shape index: {}]
  %s4 = inlined_call_operand.vmem [shape: bf16[128,384], index: 4, kind: input, shape index: {}]
  %s5 = inlined_call_operand.vmem [shape: f32[1,384], index: 5, kind: input, shape index: {}]
  %s6 = inlined_call_operand.hbm [shape: bf16[128,384], index: 6, kind: input, shape index: {}]
  %s7 = inlined_call_operand.vmem [shape: f32[1,384], index: 7, kind: input, shape index: {}]
  %s8 = inlined_call_operand.vmem [shape: bf16[512,16], index: 8, kind: input, shape index: {}]
  %s9 = inlined_call_operand.vmem [shape: f32[1,16], index: 9, kind: input, shape index: {}]
  %s10 = inlined_call_operand.hbm [shape: f32[2,16], index: 10, kind: output, shape index: {}]
  %s11 = sld [smem:[#allocation0]]
  $region54: #{tpu_custom_call.1} parent=0
    _
  %s13 = ssub.s32 1, %s11
  %s14 = scalar_select 0, %s13, %s11
  $region1: #{tpu_custom_call.1} parent=0
    #allocation2 [shape = 'u8[98304]{0}', space=vmem, size = 0x18000, scoped, tag = 'input window, operand 6, single buffered']
    #allocation3 [shape = 's32[1]{0}', space=sflag, size = 0x4, scoped, tag = 'scoped memory for tpu_custom_call.1']
    #allocation4 [shape = 's32[1]{0}', space=sflag, size = 0x4, scoped, tag = 'scoped memory for tpu_custom_call.1']
    #allocation5 [shape = 'u8[1024]{0}', space=vmem, size = 0x400, scoped, tag = 'output window, operand 0, single buffered']
    %15 = vsyncpa [#allocation3], 0
    %16 = vsyncpa [#allocation4], 0
    // Predicated region
    $region2: #{tpu_custom_call.1} parent=1 // pred_check
      _
    $region3: #{tpu_custom_call.1} parent=1 // pred_check_branch
      %18 = sbr.rel (0) target = $region5
    $region4: #{tpu_custom_call.1} parent=1 // pred_region
      _
    $region5: #{tpu_custom_call.1} parent=1 // pred_fallthru
      _
    // Predicated region
    $region6: #{tpu_custom_call.1} parent=1 // pred_check
      _
    $region7: #{tpu_custom_call.1} parent=1 // pred_check_branch
      %20 = sbr.rel (0) target = $region9
    $region8: #{tpu_custom_call.1} parent=1 // pred_region
      _
    $region9: #{tpu_custom_call.1} parent=1 // pred_fallthru
      _
    // Predicated region
    $region10: #{tpu_custom_call.1} parent=1 // pred_check
      _
    $region11: #{tpu_custom_call.1} parent=1 // pred_check_branch
      %22 = sbr.rel (0) target = $region13
    $region12: #{tpu_custom_call.1} parent=1 // pred_region
      _
    $region13: #{tpu_custom_call.1} parent=1 // pred_fallthru
      _
    // Predicated region
    $region14: #{tpu_custom_call.1} parent=1 // pred_check
      _
    $region15: #{tpu_custom_call.1} parent=1 // pred_check_branch
      %24 = sbr.rel (0) target = $region17
    $region16: #{tpu_custom_call.1} parent=1 // pred_region
      _
    $region17: #{tpu_custom_call.1} parent=1 // pred_fallthru
      _
    // Predicated region
    $region18: #{tpu_custom_call.1} parent=1 // pred_check
      _
    $region19: #{tpu_custom_call.1} parent=1 // pred_check_branch
      %26 = sbr.rel (0) target = $region21
    $region20: #{tpu_custom_call.1} parent=1 // pred_region
      _
    $region21: #{tpu_custom_call.1} parent=1 // pred_fallthru
      _
    // Predicated region
    $region22: #{tpu_custom_call.1} parent=1 // pred_check
      _
    $region23: #{tpu_custom_call.1} parent=1 // pred_check_branch
      %28 = sbr.rel (0) target = $region25
    $region24: #{tpu_custom_call.1} parent=1 // pred_region
      _
    $region25: #{tpu_custom_call.1} parent=1 // pred_fallthru
      _
    // Predicated region
    $region26: #{tpu_custom_call.1} parent=1 // pred_check
      _
    $region27: #{tpu_custom_call.1} parent=1 // pred_check_branch
      %30 = sbr.rel (0) target = $region29
    $region28: #{tpu_custom_call.1} parent=1 // pred_region
      %s32 = ssub.s32 3072, 3072
      %33 = vsyncadd [#allocation3], %s32
      %s34 = sshll.u32 [#allocation2], 4
      %s35 = int_to_ptr.vmem [resolvable:$true] %s34
      %40 = dma.hbm_to_vmem [thread:$0]  %s6, 3072, %s35, [#allocation3], 192, 192, 12
    $region29: #{tpu_custom_call.1} parent=1 // pred_fallthru
      _
    // Predicated region
    $region30: #{tpu_custom_call.1} parent=1 // pred_check
      _
    $region31: #{tpu_custom_call.1} parent=1 // pred_check_branch
      %42 = sbr.rel (0) target = $region33
    $region32: #{tpu_custom_call.1} parent=1 // pred_region
      _
    $region33: #{tpu_custom_call.1} parent=1 // pred_fallthru
      _
    // Predicated region
    $region34: #{tpu_custom_call.1} parent=1 // pred_check
      _
    $region35: #{tpu_custom_call.1} parent=1 // pred_check_branch
      %44 = sbr.rel (0) target = $region37
    $region36: #{tpu_custom_call.1} parent=1 // pred_region
      _
    $region37: #{tpu_custom_call.1} parent=1 // pred_fallthru
      _
    // Predicated region
    $region38: #{tpu_custom_call.1} parent=1 // pred_check
      _
    $region39: #{tpu_custom_call.1} parent=1 // pred_check_branch
      %46 = sbr.rel (0) target = $region41
    $region40: #{tpu_custom_call.1} parent=1 // pred_region
      _
    $region41: #{tpu_custom_call.1} parent=1 // pred_fallthru
      _
    // Predicated region
    $region42: #{tpu_custom_call.1} parent=1 // pred_check
      _
    $region43: #{tpu_custom_call.1} parent=1 // pred_check_branch
      %48 = sbr.rel (0) target = $region45
    $region44: #{tpu_custom_call.1} parent=1 // pred_region
      %49 = dma.done [#allocation3], 3072
    $region45: #{tpu_custom_call.1} parent=1 // pred_fallthru
      _
    %v51 = vld [vmem:[%s0] sm:$0xff]
    %v52 = vld [vmem:[%s0 + $0x8] sm:$0xff]
    %v53 = vld [vmem:[%s2] sm:$0xff]
    %v54 = vld [vmem:[%s2 + $0x8] sm:$0xff]
    %v55 = vld [vmem:[%s2 + $0x10] sm:$0xff]
    %v56 = vld [vmem:[%s3] sm:$0x3f]
    %v58 = vlaneseq
    %v59 = vshrl.u32 %v58, 7
    %v60 = vsub.s32 0, %v59
    %v61 = vrot.slane %v56, %v60
    %v62 = vlaneseq
    %v63 = vshrl.u32 %v62, 7
    %v64 = vsub.s32 1, %v63
    %v65 = vrot.slane %v56, %v64
    %v66 = vlaneseq
    %v67 = vshrl.u32 %v66, 7
    %v68 = vsub.s32 2, %v67
    %v69 = vrot.slane %v56, %v68
    %v70 = vlaneseq
    %v71 = vshrl.u32 %v70, 7
    %v72 = vsub.s32 3, %v71
    %v73 = vrot.slane %v56, %v72
    %v74 = vlaneseq
    %v75 = vshrl.u32 %v74, 7
    %v76 = vsub.s32 4, %v75
    %v77 = vrot.slane %v56, %v76
    %v78 = vlaneseq
    %v79 = vshrl.u32 %v78, 7
    %v80 = vsub.s32 5, %v79
    %v81 = vrot.slane %v56, %v80
    %v91 = vcombine.high %v53, %v53
    %v92 = vcombine.high %v54, %v54
    %v93 = vcombine.high %v55, %v55
    %vm94 = vcmask 31744
    %v96 = vsel %vm94, %v51, 0
    %v99 = vsel %vm94, %v52, 0
    %vm101 = vcmask 1043456
    %v102 = vsel %vm101, %v53, 0
    %v104 = vsel %vm101, %v91, 0
    %v106 = vsel %vm101, %v54, 0
    %v108 = vsel %vm101, %v92, 0
    %v110 = vsel %vm101, %v55, 0
    %v112 = vsel %vm101, %v93, 0
    %114 = vmatprep.subr.mxu0 0.0
    %115 = vmatpush1.msra.mxu0 0.0
    %116 = vmatprep.subr.mxu0 0.0
    %117 = vmatpush1.msra.mxu0 0.0
    %118 = vmatprep.subr.mxu0 0.0
    %119 = vmatpush1.msra.mxu0 0.0
    %120 = vmatprep.subr.mxu0 0.0
    %121 = vmatpush1.msra.mxu0 0.0
    %122 = vmatprep.subr.mxu0 0.0
    %123 = vmatpush1.msra.mxu0 0.0
    %124 = vmatprep.subr.mxu0 0.0
    %125 = vmatpush1.msra.mxu0 0.0
    %126 = vmatprep.subr.mxu0 0.0
    %127 = vmatpush1.msra.mxu0 0.0
    %128 = vmatprep.subr.mxu0 0.0
    %129 = vmatpush1.msra.mxu0 0.0
    %130 = vmatprep.subr.mxu0 0.0
    %131 = vmatpush1.msra.mxu0 0.0
    %132 = vmatprep.subr.mxu0 0.0
    %133 = vmatpush1.msra.mxu0 0.0
    %134 = vmatprep.subr.mxu0 0.0
    %135 = vmatpush1.msra.mxu0 0.0
    %136 = vmatprep.subr.mxu0 0.0
    %137 = vmatpush1.msra.mxu0 0.0
    %138 = vmatprep.subr.mxu0 0.0
    %139 = vmatpush1.msra.mxu0 0.0
    %140 = vmatprep.subr.mxu0 0.0
    %141 = vmatpush1.msra.mxu0 0.0
    %142 = vmatprep.subr.mxu0 0.0
    %143 = vmatpush1.msra.mxu0 0.0
    %144 = vmatprep.subr.mxu0 %v104
    %145 = vmatpush1.msra.mxu0 %v102
    %146 = vmatprep.subr.mxu0 0.0
    %147 = vmatpush2.msra.mxu0 0.0
    %148 = vmatprep.subr.mxu0 0.0
    %149 = vmatpush2.msra.mxu0 0.0
    %150 = vmatprep.subr.mxu0 0.0
    %151 = vmatpush2.msra.mxu0 0.0
    %152 = vmatprep.subr.mxu0 0.0
    %153 = vmatpush2.msra.mxu0 0.0
    %154 = vmatprep.subr.mxu0 0.0
    %155 = vmatpush2.msra.mxu0 0.0
    %156 = vmatprep.subr.mxu0 0.0
    %157 = vmatpush2.msra.mxu0 0.0
    %158 = vmatprep.subr.mxu0 0.0
    %159 = vmatpush2.msra.mxu0 0.0
    %160 = vmatprep.subr.mxu0 0.0
    %161 = vmatpush2.msra.mxu0 0.0
    %162 = vmatprep.subr.mxu0 0.0
    %163 = vmatpush2.msra.mxu0 0.0
    %164 = vmatprep.subr.mxu0 0.0
    %165 = vmatpush2.msra.mxu0 0.0
    %166 = vmatprep.subr.mxu0 0.0
    %167 = vmatpush2.msra.mxu0 0.0
    %168 = vmatprep.subr.mxu0 0.0
    %169 = vmatpush2.msra.mxu0 0.0
    %170 = vmatprep.subr.mxu0 0.0
    %171 = vmatpush2.msra.mxu0 0.0
    %172 = vmatprep.subr.mxu0 0.0
    %173 = vmatpush2.msra.mxu0 0.0
    %174 = vmatprep.subr.mxu0 0.0
    %175 = vmatpush2.msra.mxu0 0.0
    %176 = vmatprep.subr.mxu0 0.0
    %177 = vmatpush2.msra.mxu0 0.0
    %178 = vmatprep.mubr.f32.mxu0 0.0
    %179 = vmatmul.mubr.f32.gmra.mxu0 %v96
    %v180 = vpop.f32.mrf.mxu0
    %v181 = vadd.f32 %v61, %v180
    %v182 = vpop.f32.mrf.mxu0
    %v183 = vadd.f32 %v65, %v182
    %184 = vmatprep.mubr.f32.mxu0 0.0
    %185 = vmatmul.mubr.f32.gmra.mxu0 %v99
    %v186 = vpop.f32.mrf.mxu0
    %v187 = vadd.f32 %v61, %v186
    %v188 = vpop.f32.mrf.mxu0
    %v189 = vadd.f32 %v65, %v188
    %190 = vdwg.mxu0
    %191 = vmatprep.subr.mxu0 0.0
    %192 = vmatpush1.msra.mxu0 0.0
    %193 = vmatprep.subr.mxu0 0.0
    %194 = vmatpush1.msra.mxu0 0.0
    %195 = vmatprep.subr.mxu0 0.0
    %196 = vmatpush1.msra.mxu0 0.0
    %197 = vmatprep.subr.mxu0 0.0
    %198 = vmatpush1.msra.mxu0 0.0
    %199 = vmatprep.subr.mxu0 0.0
    %200 = vmatpush1.msra.mxu0 0.0
    %201 = vmatprep.subr.mxu0 0.0
    %202 = vmatpush1.msra.mxu0 0.0
    %203 = vmatprep.subr.mxu0 0.0
    %204 = vmatpush1.msra.mxu0 0.0
    %205 = vmatprep.subr.mxu0 0.0
    %206 = vmatpush1.msra.mxu0 0.0
    %207 = vmatprep.subr.mxu0 0.0
    %208 = vmatpush1.msra.mxu0 0.0
    %209 = vmatprep.subr.mxu0 0.0
    %210 = vmatpush1.msra.mxu0 0.0
    %211 = vmatprep.subr.mxu0 0.0
    %212 = vmatpush1.msra.mxu0 0.0
    %213 = vmatprep.subr.mxu0 0.0
    %214 = vmatpush1.msra.mxu0 0.0
    %215 = vmatprep.subr.mxu0 0.0
    %216 = vmatpush1.msra.mxu0 0.0
    %217 = vmatprep.subr.mxu0 0.0
    %218 = vmatpush1.msra.mxu0 0.0
    %219 = vmatprep.subr.mxu0 0.0
    %220 = vmatpush1.msra.mxu0 0.0
    %221 = vmatprep.subr.mxu0 %v108
    %222 = vmatpush1.msra.mxu0 %v106
    %223 = vmatprep.subr.mxu0 0.0
    %224 = vmatpush2.msra.mxu0 0.0
    %225 = vmatprep.subr.mxu0 0.0
    %226 = vmatpush2.msra.mxu0 0.0
    %227 = vmatprep.subr.mxu0 0.0
    %228 = vmatpush2.msra.mxu0 0.0
    %229 = vmatprep.subr.mxu0 0.0
    %230 = vmatpush2.msra.mxu0 0.0
    %231 = vmatprep.subr.mxu0 0.0
    %232 = vmatpush2.msra.mxu0 0.0
    %233 = vmatprep.subr.mxu0 0.0
    %234 = vmatpush2.msra.mxu0 0.0
    %235 = vmatprep.subr.mxu0 0.0
    %236 = vmatpush2.msra.mxu0 0.0
    %237 = vmatprep.subr.mxu0 0.0
    %238 = vmatpush2.msra.mxu0 0.0
    %239 = vmatprep.subr.mxu0 0.0
    %240 = vmatpush2.msra.mxu0 0.0
    %241 = vmatprep.subr.mxu0 0.0
    %242 = vmatpush2.msra.mxu0 0.0
    %243 = vmatprep.subr.mxu0 0.0
    %244 = vmatpush2.msra.mxu0 0.0
    %245 = vmatprep.subr.mxu0 0.0
    %246 = vmatpush2.msra.mxu0 0.0
    %247 = vmatprep.subr.mxu0 0.0
    %248 = vmatpush2.msra.mxu0 0.0
    %249 = vmatprep.subr.mxu0 0.0
    %250 = vmatpush2.msra.mxu0 0.0
    %251 = vmatprep.subr.mxu0 0.0
    %252 = vmatpush2.msra.mxu0 0.0
    %253 = vmatprep.subr.mxu0 0.0
    %254 = vmatpush2.msra.mxu0 0.0
    %255 = vmatprep.mubr.f32.mxu0 0.0
    %256 = vmatmul.mubr.f32.gmra.mxu0 %v96
    %v257 = vpop.f32.mrf.mxu0
    %v258 = vadd.f32 %v69, %v257
    %v259 = vpop.f32.mrf.mxu0
    %v260 = vadd.f32 %v73, %v259
    %261 = vmatprep.mubr.f32.mxu0 0.0
    %262 = vmatmul.mubr.f32.gmra.mxu0 %v99
    %v263 = vpop.f32.mrf.mxu0
    %v264 = vadd.f32 %v69, %v263
    %v265 = vpop.f32.mrf.mxu0
    %v266 = vadd.f32 %v73, %v265
    %267 = vdwg.mxu0
    %268 = vmatprep.subr.mxu0 0.0
    %269 = vmatpush1.msra.mxu0 0.0
    %270 = vmatprep.subr.mxu0 0.0
    %271 = vmatpush1.msra.mxu0 0.0
    %272 = vmatprep.subr.mxu0 0.0
    %273 = vmatpush1.msra.mxu0 0.0
    %274 = vmatprep.subr.mxu0 0.0
    %275 = vmatpush1.msra.mxu0 0.0
    %276 = vmatprep.subr.mxu0 0.0
    %277 = vmatpush1.msra.mxu0 0.0
    %278 = vmatprep.subr.mxu0 0.0
    %279 = vmatpush1.msra.mxu0 0.0
    %280 = vmatprep.subr.mxu0 0.0
    %281 = vmatpush1.msra.mxu0 0.0
    %282 = vmatprep.subr.mxu0 0.0
    %283 = vmatpush1.msra.mxu0 0.0
    %284 = vmatprep.subr.mxu0 0.0
    %285 = vmatpush1.msra.mxu0 0.0
    %286 = vmatprep.subr.mxu0 0.0
    %287 = vmatpush1.msra.mxu0 0.0
    %288 = vmatprep.subr.mxu0 0.0
    %289 = vmatpush1.msra.mxu0 0.0
    %290 = vmatprep.subr.mxu0 0.0
    %291 = vmatpush1.msra.mxu0 0.0
    %292 = vmatprep.subr.mxu0 0.0
    %293 = vmatpush1.msra.mxu0 0.0
    %294 = vmatprep.subr.mxu0 0.0
    %295 = vmatpush1.msra.mxu0 0.0
    %296 = vmatprep.subr.mxu0 0.0
    %297 = vmatpush1.msra.mxu0 0.0
    %298 = vmatprep.subr.mxu0 %v112
    %299 = vmatpush1.msra.mxu0 %v110
    %300 = vmatprep.subr.mxu0 0.0
    %301 = vmatpush2.msra.mxu0 0.0
    %302 = vmatprep.subr.mxu0 0.0
    %303 = vmatpush2.msra.mxu0 0.0
    %304 = vmatprep.subr.mxu0 0.0
    %305 = vmatpush2.msra.mxu0 0.0
    %306 = vmatprep.subr.mxu0 0.0
    %307 = vmatpush2.msra.mxu0 0.0
    %308 = vmatprep.subr.mxu0 0.0
    %309 = vmatpush2.msra.mxu0 0.0
    %310 = vmatprep.subr.mxu0 0.0
    %311 = vmatpush2.msra.mxu0 0.0
    %312 = vmatprep.subr.mxu0 0.0
    %313 = vmatpush2.msra.mxu0 0.0
    %314 = vmatprep.subr.mxu0 0.0
    %315 = vmatpush2.msra.mxu0 0.0
    %316 = vmatprep.subr.mxu0 0.0
    %317 = vmatpush2.msra.mxu0 0.0
    %318 = vmatprep.subr.mxu0 0.0
    %319 = vmatpush2.msra.mxu0 0.0
    %320 = vmatprep.subr.mxu0 0.0
    %321 = vmatpush2.msra.mxu0 0.0
    %322 = vmatprep.subr.mxu0 0.0
    %323 = vmatpush2.msra.mxu0 0.0
    %324 = vmatprep.subr.mxu0 0.0
    %325 = vmatpush2.msra.mxu0 0.0
    %326 = vmatprep.subr.mxu0 0.0
    %327 = vmatpush2.msra.mxu0 0.0
    %328 = vmatprep.subr.mxu0 0.0
    %329 = vmatpush2.msra.mxu0 0.0
    %330 = vmatprep.subr.mxu0 0.0
    %331 = vmatpush2.msra.mxu0 0.0
    %332 = vmatprep.mubr.f32.mxu0 0.0
    %333 = vmatmul.mubr.f32.gmra.mxu0 %v96
    %v334 = vpop.f32.mrf.mxu0
    %v335 = vadd.f32 %v77, %v334
    %v336 = vpop.f32.mrf.mxu0
    %v337 = vadd.f32 %v81, %v336
    %338 = vmatprep.mubr.f32.mxu0 0.0
    %339 = vmatmul.mubr.f32.gmra.mxu0 %v99
    %v340 = vpop.f32.mrf.mxu0
    %v341 = vadd.f32 %v77, %v340
    %v342 = vpop.f32.mrf.mxu0
    %v343 = vadd.f32 %v81, %v342
    %344 = vdwg.mxu0
    %v345 = vld [vmem:[%s5] sm:$0x7]
    %v347 = vlaneseq
    %v348 = vshrl.u32 %v347, 7
    %v349 = vsub.s32 0, %v348
    %v350 = vrot.slane %v345, %v349
    %v351 = vlaneseq
    %v352 = vshrl.u32 %v351, 7
    %v353 = vsub.s32 1, %v352
    %v354 = vrot.slane %v345, %v353
    %v355 = vlaneseq
    %v356 = vshrl.u32 %v355, 7
    %v357 = vsub.s32 2, %v356
    %v358 = vrot.slane %v345, %v357
    %v362 = vld [vmem:[%s4] sm:$0xff]
    %v363 = vld [vmem:[%s4 + $0x8] sm:$0xf]
    %v364 = vld [vmem:[%s4 + $0xc] sm:$0xff]
    %v365 = vld [vmem:[%s4 + $0x14] sm:$0xf]
    %v366 = vld [vmem:[%s4 + $0x18] sm:$0xff]
    %v367 = vld [vmem:[%s4 + $0x20] sm:$0xf]
    %v368 = vld [vmem:[%s4 + $0x24] sm:$0xff]
    %v369 = vld [vmem:[%s4 + $0x2c] sm:$0xf]
    %v370 = vld [vmem:[%s4 + $0x30] sm:$0xff]
    %v371 = vld [vmem:[%s4 + $0x38] sm:$0xf]
    %v372 = vld [vmem:[%s4 + $0x3c] sm:$0xff]
    %v373 = vld [vmem:[%s4 + $0x44] sm:$0xf]
    %v374 = vld [vmem:[%s4 + $0x48] sm:$0xff]
    %v375 = vld [vmem:[%s4 + $0x50] sm:$0xf]
    %v376 = vld [vmem:[%s4 + $0x54] sm:$0xff]
    %v377 = vld [vmem:[%s4 + $0x5c] sm:$0xf]
    %v378 = vld [vmem:[%s4 + $0x60] sm:$0xff]
    %v379 = vld [vmem:[%s4 + $0x68] sm:$0xf]
    %v380 = vld [vmem:[%s4 + $0x6c] sm:$0xff]
    %v381 = vld [vmem:[%s4 + $0x74] sm:$0xf]
    %v382 = vld [vmem:[%s4 + $0x78] sm:$0xff]
    %v383 = vld [vmem:[%s4 + $0x80] sm:$0xf]
    %v384 = vld [vmem:[%s4 + $0x84] sm:$0xff]
    %v385 = vld [vmem:[%s4 + $0x8c] sm:$0xf]
    %v386 = vld [vmem:[%s4 + $0x90] sm:$0xff]
    %v387 = vld [vmem:[%s4 + $0x98] sm:$0xf]
    %v388 = vld [vmem:[%s4 + $0x9c] sm:$0xff]
    %v389 = vld [vmem:[%s4 + $0xa4] sm:$0xf]
    %v390 = vld [vmem:[%s4 + $0xa8] sm:$0xff]
    %v391 = vld [vmem:[%s4 + $0xb0] sm:$0xf]
    %v392 = vld [vmem:[%s4 + $0xb4] sm:$0xff]
    %v393 = vld [vmem:[%s4 + $0xbc] sm:$0xf]
    %v426 = vunpack.c.l.b16 %v362
    %v427 = vunpack.c.h.b16 %v362
    %v428 = vunpack.c.l.b16 %v363
    %v429 = vunpack.c.l.b16 %v364
    %v430 = vunpack.c.h.b16 %v364
    %v431 = vunpack.c.l.b16 %v365
    %v432 = vunpack.c.l.b16 %v366
    %v433 = vunpack.c.h.b16 %v366
    %v434 = vunpack.c.l.b16 %v367
    %v435 = vunpack.c.l.b16 %v368
    %v436 = vunpack.c.h.b16 %v368
    %v437 = vunpack.c.l.b16 %v369
    %v438 = vunpack.c.l.b16 %v370
    %v439 = vunpack.c.h.b16 %v370
    %v440 = vunpack.c.l.b16 %v371
    %v441 = vunpack.c.l.b16 %v372
    %v442 = vunpack.c.h.b16 %v372
    %v443 = vunpack.c.l.b16 %v373
    %v444 = vunpack.c.l.b16 %v374
    %v445 = vunpack.c.h.b16 %v374
    %v446 = vunpack.c.l.b16 %v375
    %v447 = vunpack.c.l.b16 %v376
    %v448 = vunpack.c.h.b16 %v376
    %v449 = vunpack.c.l.b16 %v377
    %v450 = vunpack.c.l.b16 %v378
    %v451 = vunpack.c.h.b16 %v378
    %v452 = vunpack.c.l.b16 %v379
    %v453 = vunpack.c.l.b16 %v380
    %v454 = vunpack.c.h.b16 %v380
    %v455 = vunpack.c.l.b16 %v381
    %v456 = vunpack.c.l.b16 %v382
    %v457 = vunpack.c.h.b16 %v382
    %v458 = vunpack.c.l.b16 %v383
    %v459 = vunpack.c.l.b16 %v384
    %v460 = vunpack.c.h.b16 %v384
    %v461 = vunpack.c.l.b16 %v385
    %v462 = vunpack.c.l.b16 %v386
    %v463 = vunpack.c.h.b16 %v386
    %v464 = vunpack.c.l.b16 %v387
    %v465 = vunpack.c.l.b16 %v388
    %v466 = vunpack.c.h.b16 %v388
    %v467 = vunpack.c.l.b16 %v389
    %v468 = vunpack.c.l.b16 %v390
    %v469 = vunpack.c.h.b16 %v390
    %v470 = vunpack.c.l.b16 %v391
    %v471 = vunpack.c.l.b16 %v392
    %v472 = vunpack.c.h.b16 %v392
    %v473 = vunpack.c.l.b16 %v393
    %v474 = vpack.c.b16 %v429, %v426
    %v475 = vpack.c.b16 %v430, %v427
    %v476 = vpack.c.b16 %v431, %v428
    %v477 = vpack.c.b16 %v435, %v432
    %v478 = vpack.c.b16 %v436, %v433
    %v479 = vpack.c.b16 %v437, %v434
    %v480 = vpack.c.b16 %v441, %v438
    %v481 = vpack.c.b16 %v442, %v439
    %v482 = vpack.c.b16 %v443, %v440
    %v483 = vpack.c.b16 %v447, %v444
    %v484 = vpack.c.b16 %v448, %v445
    %v485 = vpack.c.b16 %v449, %v446
    %v486 = vpack.c.b16 %v453, %v450
    %v487 = vpack.c.b16 %v454, %v451
    %v488 = vpack.c.b16 %v455, %v452
    %v489 = vpack.c.b16 %v459, %v456
    %v490 = vpack.c.b16 %v460, %v457
    %v491 = vpack.c.b16 %v461, %v458
    %v492 = vpack.c.b16 %v465, %v462
    %v493 = vpack.c.b16 %v466, %v463
    %v494 = vpack.c.b16 %v467, %v464
    %v495 = vpack.c.b16 %v471, %v468
    %v496 = vpack.c.b16 %v472, %v469
    %v497 = vpack.c.b16 %v473, %v470
    %522 = vmatprep.subr.bf16.mxu0 %v496
    %523 = vmatpush1.bf16.msra.mxu0 %v495
    %524 = vmatprep.subr.bf16.mxu0 %v493
    %525 = vmatpush1.bf16.msra.mxu0 %v492
    %526 = vmatprep.subr.bf16.mxu0 %v490
    %527 = vmatpush1.bf16.msra.mxu0 %v489
    %528 = vmatprep.subr.bf16.mxu0 %v487
    %529 = vmatpush1.bf16.msra.mxu0 %v486
    %530 = vmatprep.subr.bf16.mxu0 %v484
    %531 = vmatpush1.bf16.msra.mxu0 %v483
    %532 = vmatprep.subr.bf16.mxu0 %v481
    %533 = vmatpush1.bf16.msra.mxu0 %v480
    %534 = vmatprep.subr.bf16.mxu0 %v478
    %535 = vmatpush1.bf16.msra.mxu0 %v477
    %536 = vmatprep.subr.bf16.mxu0 %v475
    %537 = vmatpush1.bf16.msra.mxu0 %v474
    %538 = vmatprep.subr.bf16.mxu0 0
    %539 = vmatpush2.bf16.msra.mxu0 0
    %540 = vmatprep.subr.bf16.mxu0 0
    %541 = vmatpush2.bf16.msra.mxu0 0
    %542 = vmatprep.subr.bf16.mxu0 0
    %543 = vmatpush2.bf16.msra.mxu0 0
    %544 = vmatprep.subr.bf16.mxu0 0
    %545 = vmatpush2.bf16.msra.mxu0 0
    %546 = vmatprep.subr.bf16.mxu0 0
    %547 = vmatpush2.bf16.msra.mxu0 0
    %548 = vmatprep.subr.bf16.mxu0 0
    %549 = vmatpush2.bf16.msra.mxu0 0
    %550 = vmatprep.subr.bf16.mxu0 0
    %551 = vmatpush2.bf16.msra.mxu0 0
    %552 = vmatprep.subr.bf16.mxu0 0
    %553 = vmatpush2.bf16.msra.mxu0 0
    %554 = vmatprep.mubr.bf16.mxu0 0
    %555 = vmatmul.mubr.bf16.gmra.mxu0 0
    %v556 = vpop.f32.mrf.mxu0
    %v557 = vadd.f32 %v350, %v556
    %v558 = vpop.f32.mrf.mxu0
    %v559 = vadd.f32 %v354, %v558
    %v560 = vpop.f32.mrf.mxu0
    %v561 = vpop.f32.mrf.mxu0
    %562 = vdwg.mxu0
    %563 = vmatprep.subr.bf16.mxu0 0
    %564 = vmatpush1.bf16.msra.mxu0 %v497
    %565 = vmatprep.subr.bf16.mxu0 0
    %566 = vmatpush1.bf16.msra.mxu0 %v494
    %567 = vmatprep.subr.bf16.mxu0 0
    %568 = vmatpush1.bf16.msra.mxu0 %v491
    %569 = vmatprep.subr.bf16.mxu0 0
    %570 = vmatpush1.bf16.msra.mxu0 %v488
    %571 = vmatprep.subr.bf16.mxu0 0
    %572 = vmatpush1.bf16.msra.mxu0 %v485
    %573 = vmatprep.subr.bf16.mxu0 0
    %574 = vmatpush1.bf16.msra.mxu0 %v482
    %575 = vmatprep.subr.bf16.mxu0 0
    %576 = vmatpush1.bf16.msra.mxu0 %v479
    %577 = vmatprep.subr.bf16.mxu0 0
    %578 = vmatpush1.bf16.msra.mxu0 %v476
    %579 = vmatprep.subr.bf16.mxu0 0
    %580 = vmatpush2.bf16.msra.mxu0 0
    %581 = vmatprep.subr.bf16.mxu0 0
    %582 = vmatpush2.bf16.msra.mxu0 0
    %583 = vmatprep.subr.bf16.mxu0 0
    %584 = vmatpush2.bf16.msra.mxu0 0
    %585 = vmatprep.subr.bf16.mxu0 0
    %586 = vmatpush2.bf16.msra.mxu0 0
    %587 = vmatprep.subr.bf16.mxu0 0
    %588 = vmatpush2.bf16.msra.mxu0 0
    %589 = vmatprep.subr.bf16.mxu0 0
    %590 = vmatpush2.bf16.msra.mxu0 0
    %591 = vmatprep.subr.bf16.mxu0 0
    %592 = vmatpush2.bf16.msra.mxu0 0
    %593 = vmatprep.subr.bf16.mxu0 0
    %594 = vmatpush2.bf16.msra.mxu0 0
    %595 = vmatprep.mubr.bf16.mxu0 0
    %596 = vmatmul.mubr.bf16.gmra.mxu0 0
    %v597 = vpop.f32.mrf.mxu0
    %v598 = vadd.f32 %v358, %v597
    %v599 = vpop.f32.mrf.mxu0
    %v600 = vpop.f32.mrf.mxu0
    %v601 = vpop.f32.mrf.mxu0
    %602 = vdwg.mxu0
    %v603 = vadd.f32 %v181, %v557
    %v604 = vadd.f32 %v183, %v559
    %v605 = vxor.u32 %v603, 2147483648
    %v606 = vxor.u32 %v604, 2147483648
    %v607 = vmul.f32 %v605, 1.442695
    %v608 = vpow.pop %v607
    %v609 = vmul.f32 %v606, 1.442695
    %v610 = vpow.pop %v609
    %v611 = vadd.f32 %v608, 1.0
    %v612 = vadd.f32 %v610, 1.0
    %v613 = vrcp.pop %v611
    %v614 = vmul.f32 1.0, %v613
    %v615 = vrcp.pop %v612
    %v616 = vmul.f32 1.0, %v615
    %v617 = vmul.f32 %v614, %v598
    %v618 = vadd.f32 %v258, %v617
    %v619 = vtanh.pop %v618
    %v620 = vsub.f32 1.0, %v616
    %v621 = vmul.f32 %v620, %v619
    %v622 = vmul.f32 %v616, 0.0
    %v623 = vadd.f32 %v621, %v622
    %v624 = vpack.c.bf16 %v623, %v623
    %625 = vmatprep.subr.bf16.mxu0 %v496
    %626 = vmatpush1.bf16.msra.mxu0 %v495
    %627 = vmatprep.subr.bf16.mxu0 %v493
    %628 = vmatpush1.bf16.msra.mxu0 %v492
    %629 = vmatprep.subr.bf16.mxu0 %v490
    %630 = vmatpush1.bf16.msra.mxu0 %v489
    %631 = vmatprep.subr.bf16.mxu0 %v487
    %632 = vmatpush1.bf16.msra.mxu0 %v486
    %633 = vmatprep.subr.bf16.mxu0 %v484
    %634 = vmatpush1.bf16.msra.mxu0 %v483
    %635 = vmatprep.subr.bf16.mxu0 %v481
    %636 = vmatpush1.bf16.msra.mxu0 %v480
    %637 = vmatprep.subr.bf16.mxu0 %v478
    %638 = vmatpush1.bf16.msra.mxu0 %v477
    %639 = vmatprep.subr.bf16.mxu0 %v475
    %640 = vmatpush1.bf16.msra.mxu0 %v474
    %641 = vmatprep.subr.bf16.mxu0 0
    %642 = vmatpush2.bf16.msra.mxu0 0
    %643 = vmatprep.subr.bf16.mxu0 0
    %644 = vmatpush2.bf16.msra.mxu0 0
    %645 = vmatprep.subr.bf16.mxu0 0
    %646 = vmatpush2.bf16.msra.mxu0 0
    %647 = vmatprep.subr.bf16.mxu0 0
    %648 = vmatpush2.bf16.msra.mxu0 0
    %649 = vmatprep.subr.bf16.mxu0 0
    %650 = vmatpush2.bf16.msra.mxu0 0
    %651 = vmatprep.subr.bf16.mxu0 0
    %652 = vmatpush2.bf16.msra.mxu0 0
    %653 = vmatprep.subr.bf16.mxu0 0
    %654 = vmatpush2.bf16.msra.mxu0 0
    %655 = vmatprep.subr.bf16.mxu0 0
    %656 = vmatpush2.bf16.msra.mxu0 0
    %657 = vmatprep.mubr.bf16.mxu0 0
    %658 = vmatmul.mubr.bf16.gmra.mxu0 %v624
    %v659 = vpop.f32.mrf.mxu0
    %v660 = vadd.f32 %v350, %v659
    %v661 = vpop.f32.mrf.mxu0
    %v662 = vadd.f32 %v354, %v661
    %v663 = vpop.f32.mrf.mxu0
    %v664 = vpop.f32.mrf.mxu0
    %665 = vdwg.mxu0
    %666 = vmatprep.subr.bf16.mxu0 0
    %667 = vmatpush1.bf16.msra.mxu0 %v497
    %668 = vmatprep.subr.bf16.mxu0 0
    %669 = vmatpush1.bf16.msra.mxu0 %v494
    %670 = vmatprep.subr.bf16.mxu0 0
    %671 = vmatpush1.bf16.msra.mxu0 %v491
    %672 = vmatprep.subr.bf16.mxu0 0
    %673 = vmatpush1.bf16.msra.mxu0 %v488
    %674 = vmatprep.subr.bf16.mxu0 0
    %675 = vmatpush1.bf16.msra.mxu0 %v485
    %676 = vmatprep.subr.bf16.mxu0 0
    %677 = vmatpush1.bf16.msra.mxu0 %v482
    %678 = vmatprep.subr.bf16.mxu0 0
    %679 = vmatpush1.bf16.msra.mxu0 %v479
    %680 = vmatprep.subr.bf16.mxu0 0
    %681 = vmatpush1.bf16.msra.mxu0 %v476
    %682 = vmatprep.subr.bf16.mxu0 0
    %683 = vmatpush2.bf16.msra.mxu0 0
    %684 = vmatprep.subr.bf16.mxu0 0
    %685 = vmatpush2.bf16.msra.mxu0 0
    %686 = vmatprep.subr.bf16.mxu0 0
    %687 = vmatpush2.bf16.msra.mxu0 0
    %688 = vmatprep.subr.bf16.mxu0 0
    %689 = vmatpush2.bf16.msra.mxu0 0
    %690 = vmatprep.subr.bf16.mxu0 0
    %691 = vmatpush2.bf16.msra.mxu0 0
    %692 = vmatprep.subr.bf16.mxu0 0
    %693 = vmatpush2.bf16.msra.mxu0 0
    %694 = vmatprep.subr.bf16.mxu0 0
    %695 = vmatpush2.bf16.msra.mxu0 0
    %696 = vmatprep.subr.bf16.mxu0 0
    %697 = vmatpush2.bf16.msra.mxu0 0
    %698 = vmatprep.mubr.bf16.mxu0 0
    %699 = vmatmul.mubr.bf16.gmra.mxu0 %v624
    %v700 = vpop.f32.mrf.mxu0
    %v701 = vadd.f32 %v358, %v700
    %v702 = vpop.f32.mrf.mxu0
    %v703 = vpop.f32.mrf.mxu0
    %v704 = vpop.f32.mrf.mxu0
    %705 = vdwg.mxu0
    %v708 = vrot.slane %v660, 6
    %v709 = vrot.slane %v662, 6
    %v712 = vadd.f32 %v181, %v708
    %v713 = vadd.f32 %v183, %v709
    %v714 = vxor.u32 %v712, 2147483648
    %v715 = vxor.u32 %v713, 2147483648
    %v716 = vmul.f32 %v714, 1.442695
    %v717 = vpow.pop %v716
    %v718 = vmul.f32 %v715, 1.442695
    %v719 = vpow.pop %v718
    %v720 = vadd.f32 %v717, 1.0
    %v721 = vadd.f32 %v719, 1.0
    %v722 = vrcp.pop %v720
    %v723 = vmul.f32 1.0, %v722
    %v724 = vrcp.pop %v721
    %v725 = vmul.f32 1.0, %v724
    %v727 = vrot.slane %v701, 6
    %v729 = vmul.f32 %v723, %v727
    %v730 = vadd.f32 %v258, %v729
    %v731 = vtanh.pop %v730
    %v732 = vsub.f32 1.0, %v725
    %v733 = vmul.f32 %v732, %v731
    %v735 = vrot.slane %v623, 6
    %v737 = vmul.f32 %v725, %v735
    %v738 = vadd.f32 %v733, %v737
    %v739 = vpack.c.bf16 %v738, %v738
    %v741 = vrot.slane %v739, 1
    %743 = vmatprep.subr.bf16.mxu0 %v496
    %744 = vmatpush1.bf16.msra.mxu0 %v495
    %745 = vmatprep.subr.bf16.mxu0 %v493
    %746 = vmatpush1.bf16.msra.mxu0 %v492
    %747 = vmatprep.subr.bf16.mxu0 %v490
    %748 = vmatpush1.bf16.msra.mxu0 %v489
    %749 = vmatprep.subr.bf16.mxu0 %v487
    %750 = vmatpush1.bf16.msra.mxu0 %v486
    %751 = vmatprep.subr.bf16.mxu0 %v484
    %752 = vmatpush1.bf16.msra.mxu0 %v483
    %753 = vmatprep.subr.bf16.mxu0 %v481
    %754 = vmatpush1.bf16.msra.mxu0 %v480
    %755 = vmatprep.subr.bf16.mxu0 %v478
    %756 = vmatpush1.bf16.msra.mxu0 %v477
    %757 = vmatprep.subr.bf16.mxu0 %v475
    %758 = vmatpush1.bf16.msra.mxu0 %v474
    %759 = vmatprep.subr.bf16.mxu0 0
    %760 = vmatpush2.bf16.msra.mxu0 0
    %761 = vmatprep.subr.bf16.mxu0 0
    %762 = vmatpush2.bf16.msra.mxu0 0
    %763 = vmatprep.subr.bf16.mxu0 0
    %764 = vmatpush2.bf16.msra.mxu0 0
    %765 = vmatprep.subr.bf16.mxu0 0
    %766 = vmatpush2.bf16.msra.mxu0 0
    %767 = vmatprep.subr.bf16.mxu0 0
    %768 = vmatpush2.bf16.msra.mxu0 0
    %769 = vmatprep.subr.bf16.mxu0 0
    %770 = vmatpush2.bf16.msra.mxu0 0
    %771 = vmatprep.subr.bf16.mxu0 0
    %772 = vmatpush2.bf16.msra.mxu0 0
    %773 = vmatprep.subr.bf16.mxu0 0
    %774 = vmatpush2.bf16.msra.mxu0 0
    %775 = vmatprep.mubr.bf16.mxu0 0
    %776 = vmatmul.mubr.bf16.gmra.mxu0 %v741
    %v777 = vpop.f32.mrf.mxu0
    %v778 = vadd.f32 %v350, %v777
    %v779 = vpop.f32.mrf.mxu0
    %v780 = vadd.f32 %v354, %v779
    %v781 = vpop.f32.mrf.mxu0
    %v782 = vpop.f32.mrf.mxu0
    %783 = vdwg.mxu0
    %784 = vmatprep.subr.bf16.mxu0 0
    %785 = vmatpush1.bf16.msra.mxu0 %v497
    %786 = vmatprep.subr.bf16.mxu0 0
    %787 = vmatpush1.bf16.msra.mxu0 %v494
    %788 = vmatprep.subr.bf16.mxu0 0
    %789 = vmatpush1.bf16.msra.mxu0 %v491
    %790 = vmatprep.subr.bf16.mxu0 0
    %791 = vmatpush1.bf16.msra.mxu0 %v488
    %792 = vmatprep.subr.bf16.mxu0 0
    %793 = vmatpush1.bf16.msra.mxu0 %v485
    %794 = vmatprep.subr.bf16.mxu0 0
    %795 = vmatpush1.bf16.msra.mxu0 %v482
    %796 = vmatprep.subr.bf16.mxu0 0
    %797 = vmatpush1.bf16.msra.mxu0 %v479
    %798 = vmatprep.subr.bf16.mxu0 0
    %799 = vmatpush1.bf16.msra.mxu0 %v476
    %800 = vmatprep.subr.bf16.mxu0 0
    %801 = vmatpush2.bf16.msra.mxu0 0
    %802 = vmatprep.subr.bf16.mxu0 0
    %803 = vmatpush2.bf16.msra.mxu0 0
    %804 = vmatprep.subr.bf16.mxu0 0
    %805 = vmatpush2.bf16.msra.mxu0 0
    %806 = vmatprep.subr.bf16.mxu0 0
    %807 = vmatpush2.bf16.msra.mxu0 0
    %808 = vmatprep.subr.bf16.mxu0 0
    %809 = vmatpush2.bf16.msra.mxu0 0
    %810 = vmatprep.subr.bf16.mxu0 0
    %811 = vmatpush2.bf16.msra.mxu0 0
    %812 = vmatprep.subr.bf16.mxu0 0
    %813 = vmatpush2.bf16.msra.mxu0 0
    %814 = vmatprep.subr.bf16.mxu0 0
    %815 = vmatpush2.bf16.msra.mxu0 0
    %816 = vmatprep.mubr.bf16.mxu0 0
    %817 = vmatmul.mubr.bf16.gmra.mxu0 %v741
    %v818 = vpop.f32.mrf.mxu0
    %v819 = vadd.f32 %v358, %v818
    %v820 = vpop.f32.mrf.mxu0
    %v821 = vpop.f32.mrf.mxu0
    %v822 = vpop.f32.mrf.mxu0
    %823 = vdwg.mxu0
    %v826 = vrot.slane %v778, 4
    %v827 = vrot.slane %v780, 4
    %v830 = vadd.f32 %v181, %v826
    %v831 = vadd.f32 %v183, %v827
    %v832 = vxor.u32 %v830, 2147483648
    %v833 = vxor.u32 %v831, 2147483648
    %v834 = vmul.f32 %v832, 1.442695
    %v835 = vpow.pop %v834
    %v836 = vmul.f32 %v833, 1.442695
    %v837 = vpow.pop %v836
    %v838 = vadd.f32 %v835, 1.0
    %v839 = vadd.f32 %v837, 1.0
    %v840 = vrcp.pop %v838
    %v841 = vmul.f32 1.0, %v840
    %v842 = vrcp.pop %v839
    %v843 = vmul.f32 1.0, %v842
    %v845 = vrot.slane %v819, 4
    %v847 = vmul.f32 %v841, %v845
    %v848 = vadd.f32 %v258, %v847
    %v849 = vtanh.pop %v848
    %v850 = vsub.f32 1.0, %v843
    %v851 = vmul.f32 %v850, %v849
    %v853 = vrot.slane %v738, 6
    %v855 = vmul.f32 %v843, %v853
    %v856 = vadd.f32 %v851, %v855
    %v857 = vpack.c.bf16 %v856, %v856
    %v859 = vrot.slane %v857, 2
    %861 = vmatprep.subr.bf16.mxu0 %v496
    %862 = vmatpush1.bf16.msra.mxu0 %v495
    %863 = vmatprep.subr.bf16.mxu0 %v493
    %864 = vmatpush1.bf16.msra.mxu0 %v492
    %865 = vmatprep.subr.bf16.mxu0 %v490
    %866 = vmatpush1.bf16.msra.mxu0 %v489
    %867 = vmatprep.subr.bf16.mxu0 %v487
    %868 = vmatpush1.bf16.msra.mxu0 %v486
    %869 = vmatprep.subr.bf16.mxu0 %v484
    %870 = vmatpush1.bf16.msra.mxu0 %v483
    %871 = vmatprep.subr.bf16.mxu0 %v481
    %872 = vmatpush1.bf16.msra.mxu0 %v480
    %873 = vmatprep.subr.bf16.mxu0 %v478
    %874 = vmatpush1.bf16.msra.mxu0 %v477
    %875 = vmatprep.subr.bf16.mxu0 %v475
    %876 = vmatpush1.bf16.msra.mxu0 %v474
    %877 = vmatprep.subr.bf16.mxu0 0
    %878 = vmatpush2.bf16.msra.mxu0 0
    %879 = vmatprep.subr.bf16.mxu0 0
    %880 = vmatpush2.bf16.msra.mxu0 0
    %881 = vmatprep.subr.bf16.mxu0 0
    %882 = vmatpush2.bf16.msra.mxu0 0
    %883 = vmatprep.subr.bf16.mxu0 0
    %884 = vmatpush2.bf16.msra.mxu0 0
    %885 = vmatprep.subr.bf16.mxu0 0
    %886 = vmatpush2.bf16.msra.mxu0 0
    %887 = vmatprep.subr.bf16.mxu0 0
    %888 = vmatpush2.bf16.msra.mxu0 0
    %889 = vmatprep.subr.bf16.mxu0 0
    %890 = vmatpush2.bf16.msra.mxu0 0
    %891 = vmatprep.subr.bf16.mxu0 0
    %892 = vmatpush2.bf16.msra.mxu0 0
    %893 = vmatprep.mubr.bf16.mxu0 0
    %894 = vmatmul.mubr.bf16.gmra.mxu0 %v859
    %v895 = vpop.f32.mrf.mxu0
    %v896 = vadd.f32 %v350, %v895
    %v897 = vpop.f32.mrf.mxu0
    %v898 = vadd.f32 %v354, %v897
    %v899 = vpop.f32.mrf.mxu0
    %v900 = vpop.f32.mrf.mxu0
    %901 = vdwg.mxu0
    %902 = vmatprep.subr.bf16.mxu0 0
    %903 = vmatpush1.bf16.msra.mxu0 %v497
    %904 = vmatprep.subr.bf16.mxu0 0
    %905 = vmatpush1.bf16.msra.mxu0 %v494
    %906 = vmatprep.subr.bf16.mxu0 0
    %907 = vmatpush1.bf16.msra.mxu0 %v491
    %908 = vmatprep.subr.bf16.mxu0 0
    %909 = vmatpush1.bf16.msra.mxu0 %v488
    %910 = vmatprep.subr.bf16.mxu0 0
    %911 = vmatpush1.bf16.msra.mxu0 %v485
    %912 = vmatprep.subr.bf16.mxu0 0
    %913 = vmatpush1.bf16.msra.mxu0 %v482
    %914 = vmatprep.subr.bf16.mxu0 0
    %915 = vmatpush1.bf16.msra.mxu0 %v479
    %916 = vmatprep.subr.bf16.mxu0 0
    %917 = vmatpush1.bf16.msra.mxu0 %v476
    %918 = vmatprep.subr.bf16.mxu0 0
    %919 = vmatpush2.bf16.msra.mxu0 0
    %920 = vmatprep.subr.bf16.mxu0 0
    %921 = vmatpush2.bf16.msra.mxu0 0
    %922 = vmatprep.subr.bf16.mxu0 0
    %923 = vmatpush2.bf16.msra.mxu0 0
    %924 = vmatprep.subr.bf16.mxu0 0
    %925 = vmatpush2.bf16.msra.mxu0 0
    %926 = vmatprep.subr.bf16.mxu0 0
    %927 = vmatpush2.bf16.msra.mxu0 0
    %928 = vmatprep.subr.bf16.mxu0 0
    %929 = vmatpush2.bf16.msra.mxu0 0
    %930 = vmatprep.subr.bf16.mxu0 0
    %931 = vmatpush2.bf16.msra.mxu0 0
    %932 = vmatprep.subr.bf16.mxu0 0
    %933 = vmatpush2.bf16.msra.mxu0 0
    %934 = vmatprep.mubr.bf16.mxu0 0
    %935 = vmatmul.mubr.bf16.gmra.mxu0 %v859
    %v936 = vpop.f32.mrf.mxu0
    %v937 = vadd.f32 %v358, %v936
    %v938 = vpop.f32.mrf.mxu0
    %v939 = vpop.f32.mrf.mxu0
    %v940 = vpop.f32.mrf.mxu0
    %941 = vdwg.mxu0
    %v944 = vrot.slane %v896, 2
    %v945 = vrot.slane %v898, 2
    %v948 = vadd.f32 %v181, %v944
    %v949 = vadd.f32 %v183, %v945
    %v950 = vxor.u32 %v948, 2147483648
    %v951 = vxor.u32 %v949, 2147483648
    %v952 = vmul.f32 %v950, 1.442695
    %v953 = vpow.pop %v952
    %v954 = vmul.f32 %v951, 1.442695
    %v955 = vpow.pop %v954
    %v956 = vadd.f32 %v953, 1.0
    %v957 = vadd.f32 %v955, 1.0
    %v958 = vrcp.pop %v956
    %v959 = vmul.f32 1.0, %v958
    %v960 = vrcp.pop %v957
    %v961 = vmul.f32 1.0, %v960
    %v963 = vrot.slane %v937, 2
    %v965 = vmul.f32 %v959, %v963
    %v966 = vadd.f32 %v258, %v965
    %v967 = vtanh.pop %v966
    %v968 = vsub.f32 1.0, %v961
    %v969 = vmul.f32 %v968, %v967
    %v971 = vrot.slane %v856, 6
    %v973 = vmul.f32 %v961, %v971
    %v974 = vadd.f32 %v969, %v973
    %v975 = vpack.c.bf16 %v974, %v974
    %v977 = vrot.slane %v975, 3
    %979 = vmatprep.subr.bf16.mxu0 %v496
    %980 = vmatpush1.bf16.msra.mxu0 %v495
    %981 = vmatprep.subr.bf16.mxu0 %v493
    %982 = vmatpush1.bf16.msra.mxu0 %v492
    %983 = vmatprep.subr.bf16.mxu0 %v490
    %984 = vmatpush1.bf16.msra.mxu0 %v489
    %985 = vmatprep.subr.bf16.mxu0 %v487
    %986 = vmatpush1.bf16.msra.mxu0 %v486
    %987 = vmatprep.subr.bf16.mxu0 %v484
    %988 = vmatpush1.bf16.msra.mxu0 %v483
    %989 = vmatprep.subr.bf16.mxu0 %v481
    %990 = vmatpush1.bf16.msra.mxu0 %v480
    %991 = vmatprep.subr.bf16.mxu0 %v478
    %992 = vmatpush1.bf16.msra.mxu0 %v477
    %993 = vmatprep.subr.bf16.mxu0 %v475
    %994 = vmatpush1.bf16.msra.mxu0 %v474
    %995 = vmatprep.subr.bf16.mxu0 0
    %996 = vmatpush2.bf16.msra.mxu0 0
    %997 = vmatprep.subr.bf16.mxu0 0
    %998 = vmatpush2.bf16.msra.mxu0 0
    %999 = vmatprep.subr.bf16.mxu0 0
    %1000 = vmatpush2.bf16.msra.mxu0 0
    %1001 = vmatprep.subr.bf16.mxu0 0
    %1002 = vmatpush2.bf16.msra.mxu0 0
    %1003 = vmatprep.subr.bf16.mxu0 0
    %1004 = vmatpush2.bf16.msra.mxu0 0
    %1005 = vmatprep.subr.bf16.mxu0 0
    %1006 = vmatpush2.bf16.msra.mxu0 0
    %1007 = vmatprep.subr.bf16.mxu0 0
    %1008 = vmatpush2.bf16.msra.mxu0 0
    %1009 = vmatprep.subr.bf16.mxu0 0
    %1010 = vmatpush2.bf16.msra.mxu0 0
    %1011 = vmatprep.mubr.bf16.mxu0 0
    %1012 = vmatmul.mubr.bf16.gmra.mxu0 %v977
    %v1013 = vpop.f32.mrf.mxu0
    %v1014 = vadd.f32 %v350, %v1013
    %v1015 = vpop.f32.mrf.mxu0
    %v1016 = vadd.f32 %v354, %v1015
    %v1017 = vpop.f32.mrf.mxu0
    %v1018 = vpop.f32.mrf.mxu0
    %1019 = vdwg.mxu0
    %1020 = vmatprep.subr.bf16.mxu0 0
    %1021 = vmatpush1.bf16.msra.mxu0 %v497
    %1022 = vmatprep.subr.bf16.mxu0 0
    %1023 = vmatpush1.bf16.msra.mxu0 %v494
    %1024 = vmatprep.subr.bf16.mxu0 0
    %1025 = vmatpush1.bf16.msra.mxu0 %v491
    %1026 = vmatprep.subr.bf16.mxu0 0
    %1027 = vmatpush1.bf16.msra.mxu0 %v488
    %1028 = vmatprep.subr.bf16.mxu0 0
    %1029 = vmatpush1.bf16.msra.mxu0 %v485
    %1030 = vmatprep.subr.bf16.mxu0 0
    %1031 = vmatpush1.bf16.msra.mxu0 %v482
    %1032 = vmatprep.subr.bf16.mxu0 0
    %1033 = vmatpush1.bf16.msra.mxu0 %v479
    %1034 = vmatprep.subr.bf16.mxu0 0
    %1035 = vmatpush1.bf16.msra.mxu0 %v476
    %1036 = vmatprep.subr.bf16.mxu0 0
    %1037 = vmatpush2.bf16.msra.mxu0 0
    %1038 = vmatprep.subr.bf16.mxu0 0
    %1039 = vmatpush2.bf16.msra.mxu0 0
    %1040 = vmatprep.subr.bf16.mxu0 0
    %1041 = vmatpush2.bf16.msra.mxu0 0
    %1042 = vmatprep.subr.bf16.mxu0 0
    %1043 = vmatpush2.bf16.msra.mxu0 0
    %1044 = vmatprep.subr.bf16.mxu0 0
    %1045 = vmatpush2.bf16.msra.mxu0 0
    %1046 = vmatprep.subr.bf16.mxu0 0
    %1047 = vmatpush2.bf16.msra.mxu0 0
    %1048 = vmatprep.subr.bf16.mxu0 0
    %1049 = vmatpush2.bf16.msra.mxu0 0
    %1050 = vmatprep.subr.bf16.mxu0 0
    %1051 = vmatpush2.bf16.msra.mxu0 0
    %1052 = vmatprep.mubr.bf16.mxu0 0
    %1053 = vmatmul.mubr.bf16.gmra.mxu0 %v977
    %v1054 = vpop.f32.mrf.mxu0
    %v1055 = vadd.f32 %v358, %v1054
    %v1056 = vpop.f32.mrf.mxu0
    %v1057 = vpop.f32.mrf.mxu0
    %v1058 = vpop.f32.mrf.mxu0
    %1059 = vdwg.mxu0
    %v1060 = vadd.f32 %v187, %v1014
    %v1061 = vadd.f32 %v189, %v1016
    %v1062 = vxor.u32 %v1060, 2147483648
    %v1063 = vxor.u32 %v1061, 2147483648
    %v1064 = vmul.f32 %v1062, 1.442695
    %v1065 = vpow.pop %v1064
    %v1066 = vmul.f32 %v1063, 1.442695
    %v1067 = vpow.pop %v1066
    %v1068 = vadd.f32 %v1065, 1.0
    %v1069 = vadd.f32 %v1067, 1.0
    %v1070 = vrcp.pop %v1068
    %v1071 = vmul.f32 1.0, %v1070
    %v1072 = vrcp.pop %v1069
    %v1073 = vmul.f32 1.0, %v1072
    %v1074 = vmul.f32 %v1071, %v1055
    %v1075 = vadd.f32 %v264, %v1074
    %v1076 = vtanh.pop %v1075
    %v1077 = vsub.f32 1.0, %v1073
    %v1078 = vmul.f32 %v1077, %v1076
    %v1080 = vrot.slane %v974, 6
    %v1082 = vmul.f32 %v1073, %v1080
    %v1083 = vadd.f32 %v1078, %v1082
    %v1084 = vpack.c.bf16 %v1083, %v1083
    %1085 = vmatprep.subr.bf16.mxu0 %v496
    %1086 = vmatpush1.bf16.msra.mxu0 %v495
    %1087 = vmatprep.subr.bf16.mxu0 %v493
    %1088 = vmatpush1.bf16.msra.mxu0 %v492
    %1089 = vmatprep.subr.bf16.mxu0 %v490
    %1090 = vmatpush1.bf16.msra.mxu0 %v489
    %1091 = vmatprep.subr.bf16.mxu0 %v487
    %1092 = vmatpush1.bf16.msra.mxu0 %v486
    %1093 = vmatprep.subr.bf16.mxu0 %v484
    %1094 = vmatpush1.bf16.msra.mxu0 %v483
    %1095 = vmatprep.subr.bf16.mxu0 %v481
    %1096 = vmatpush1.bf16.msra.mxu0 %v480
    %1097 = vmatprep.subr.bf16.mxu0 %v478
    %1098 = vmatpush1.bf16.msra.mxu0 %v477
    %1099 = vmatprep.subr.bf16.mxu0 %v475
    %1100 = vmatpush1.bf16.msra.mxu0 %v474
    %1101 = vmatprep.subr.bf16.mxu0 0
    %1102 = vmatpush2.bf16.msra.mxu0 0
    %1103 = vmatprep.subr.bf16.mxu0 0
    %1104 = vmatpush2.bf16.msra.mxu0 0
    %1105 = vmatprep.subr.bf16.mxu0 0
    %1106 = vmatpush2.bf16.msra.mxu0 0
    %1107 = vmatprep.subr.bf16.mxu0 0
    %1108 = vmatpush2.bf16.msra.mxu0 0
    %1109 = vmatprep.subr.bf16.mxu0 0
    %1110 = vmatpush2.bf16.msra.mxu0 0
    %1111 = vmatprep.subr.bf16.mxu0 0
    %1112 = vmatpush2.bf16.msra.mxu0 0
    %1113 = vmatprep.subr.bf16.mxu0 0
    %1114 = vmatpush2.bf16.msra.mxu0 0
    %1115 = vmatprep.subr.bf16.mxu0 0
    %1116 = vmatpush2.bf16.msra.mxu0 0
    %1117 = vmatprep.mubr.bf16.mxu0 0
    %1118 = vmatmul.mubr.bf16.gmra.mxu0 %v1084
    %v1119 = vpop.f32.mrf.mxu0
    %v1120 = vadd.f32 %v350, %v1119
    %v1121 = vpop.f32.mrf.mxu0
    %v1122 = vadd.f32 %v354, %v1121
    %v1123 = vpop.f32.mrf.mxu0
    %v1124 = vpop.f32.mrf.mxu0
    %1125 = vdwg.mxu0
    %1126 = vmatprep.subr.bf16.mxu0 0
    %1127 = vmatpush1.bf16.msra.mxu0 %v497
    %1128 = vmatprep.subr.bf16.mxu0 0
    %1129 = vmatpush1.bf16.msra.mxu0 %v494
    %1130 = vmatprep.subr.bf16.mxu0 0
    %1131 = vmatpush1.bf16.msra.mxu0 %v491
    %1132 = vmatprep.subr.bf16.mxu0 0
    %1133 = vmatpush1.bf16.msra.mxu0 %v488
    %1134 = vmatprep.subr.bf16.mxu0 0
    %1135 = vmatpush1.bf16.msra.mxu0 %v485
    %1136 = vmatprep.subr.bf16.mxu0 0
    %1137 = vmatpush1.bf16.msra.mxu0 %v482
    %1138 = vmatprep.subr.bf16.mxu0 0
    %1139 = vmatpush1.bf16.msra.mxu0 %v479
    %1140 = vmatprep.subr.bf16.mxu0 0
    %1141 = vmatpush1.bf16.msra.mxu0 %v476
    %1142 = vmatprep.subr.bf16.mxu0 0
    %1143 = vmatpush2.bf16.msra.mxu0 0
    %1144 = vmatprep.subr.bf16.mxu0 0
    %1145 = vmatpush2.bf16.msra.mxu0 0
    %1146 = vmatprep.subr.bf16.mxu0 0
    %1147 = vmatpush2.bf16.msra.mxu0 0
    %1148 = vmatprep.subr.bf16.mxu0 0
    %1149 = vmatpush2.bf16.msra.mxu0 0
    %1150 = vmatprep.subr.bf16.mxu0 0
    %1151 = vmatpush2.bf16.msra.mxu0 0
    %1152 = vmatprep.subr.bf16.mxu0 0
    %1153 = vmatpush2.bf16.msra.mxu0 0
    %1154 = vmatprep.subr.bf16.mxu0 0
    %1155 = vmatpush2.bf16.msra.mxu0 0
    %1156 = vmatprep.subr.bf16.mxu0 0
    %1157 = vmatpush2.bf16.msra.mxu0 0
    %1158 = vmatprep.mubr.bf16.mxu0 0
    %1159 = vmatmul.mubr.bf16.gmra.mxu0 %v1084
    %v1160 = vpop.f32.mrf.mxu0
    %v1161 = vadd.f32 %v358, %v1160
    %v1162 = vpop.f32.mrf.mxu0
    %v1163 = vpop.f32.mrf.mxu0
    %v1164 = vpop.f32.mrf.mxu0
    %1165 = vdwg.mxu0
    %v1168 = vrot.slane %v1120, 6
    %v1169 = vrot.slane %v1122, 6
    %v1172 = vadd.f32 %v187, %v1168
    %v1173 = vadd.f32 %v189, %v1169
    %v1174 = vxor.u32 %v1172, 2147483648
    %v1175 = vxor.u32 %v1173, 2147483648
    %v1176 = vmul.f32 %v1174, 1.442695
    %v1177 = vpow.pop %v1176
    %v1178 = vmul.f32 %v1175, 1.442695
    %v1179 = vpow.pop %v1178
    %v1180 = vadd.f32 %v1177, 1.0
    %v1181 = vadd.f32 %v1179, 1.0
    %v1182 = vrcp.pop %v1180
    %v1183 = vmul.f32 1.0, %v1182
    %v1184 = vrcp.pop %v1181
    %v1185 = vmul.f32 1.0, %v1184
    %v1187 = vrot.slane %v1161, 6
    %v1189 = vmul.f32 %v1183, %v1187
    %v1190 = vadd.f32 %v264, %v1189
    %v1191 = vtanh.pop %v1190
    %v1192 = vsub.f32 1.0, %v1185
    %v1193 = vmul.f32 %v1192, %v1191
    %v1195 = vrot.slane %v1083, 6
    %v1197 = vmul.f32 %v1185, %v1195
    %v1198 = vadd.f32 %v1193, %v1197
    %v1199 = vpack.c.bf16 %v1198, %v1198
    %v1201 = vrot.slane %v1199, 1
    %1203 = vmatprep.subr.bf16.mxu0 %v496
    %1204 = vmatpush1.bf16.msra.mxu0 %v495
    %1205 = vmatprep.subr.bf16.mxu0 %v493
    %1206 = vmatpush1.bf16.msra.mxu0 %v492
    %1207 = vmatprep.subr.bf16.mxu0 %v490
    %1208 = vmatpush1.bf16.msra.mxu0 %v489
    %1209 = vmatprep.subr.bf16.mxu0 %v487
    %1210 = vmatpush1.bf16.msra.mxu0 %v486
    %1211 = vmatprep.subr.bf16.mxu0 %v484
    %1212 = vmatpush1.bf16.msra.mxu0 %v483
    %1213 = vmatprep.subr.bf16.mxu0 %v481
    %1214 = vmatpush1.bf16.msra.mxu0 %v480
    %1215 = vmatprep.subr.bf16.mxu0 %v478
    %1216 = vmatpush1.bf16.msra.mxu0 %v477
    %1217 = vmatprep.subr.bf16.mxu0 %v475
    %1218 = vmatpush1.bf16.msra.mxu0 %v474
    %1219 = vmatprep.subr.bf16.mxu0 0
    %1220 = vmatpush2.bf16.msra.mxu0 0
    %1221 = vmatprep.subr.bf16.mxu0 0
    %1222 = vmatpush2.bf16.msra.mxu0 0
    %1223 = vmatprep.subr.bf16.mxu0 0
    %1224 = vmatpush2.bf16.msra.mxu0 0
    %1225 = vmatprep.subr.bf16.mxu0 0
    %1226 = vmatpush2.bf16.msra.mxu0 0
    %1227 = vmatprep.subr.bf16.mxu0 0
    %1228 = vmatpush2.bf16.msra.mxu0 0
    %1229 = vmatprep.subr.bf16.mxu0 0
    %1230 = vmatpush2.bf16.msra.mxu0 0
    %1231 = vmatprep.subr.bf16.mxu0 0
    %1232 = vmatpush2.bf16.msra.mxu0 0
    %1233 = vmatprep.subr.bf16.mxu0 0
    %1234 = vmatpush2.bf16.msra.mxu0 0
    %1235 = vmatprep.mubr.bf16.mxu0 0
    %1236 = vmatmul.mubr.bf16.gmra.mxu0 %v1201
    %v1237 = vpop.f32.mrf.mxu0
    %v1238 = vadd.f32 %v350, %v1237
    %v1239 = vpop.f32.mrf.mxu0
    %v1240 = vadd.f32 %v354, %v1239
    %v1241 = vpop.f32.mrf.mxu0
    %v1242 = vpop.f32.mrf.mxu0
    %1243 = vdwg.mxu0
    %1244 = vmatprep.subr.bf16.mxu0 0
    %1245 = vmatpush1.bf16.msra.mxu0 %v497
    %1246 = vmatprep.subr.bf16.mxu0 0
    %1247 = vmatpush1.bf16.msra.mxu0 %v494
    %1248 = vmatprep.subr.bf16.mxu0 0
    %1249 = vmatpush1.bf16.msra.mxu0 %v491
    %1250 = vmatprep.subr.bf16.mxu0 0
    %1251 = vmatpush1.bf16.msra.mxu0 %v488
    %1252 = vmatprep.subr.bf16.mxu0 0
    %1253 = vmatpush1.bf16.msra.mxu0 %v485
    %1254 = vmatprep.subr.bf16.mxu0 0
    %1255 = vmatpush1.bf16.msra.mxu0 %v482
    %1256 = vmatprep.subr.bf16.mxu0 0
    %1257 = vmatpush1.bf16.msra.mxu0 %v479
    %1258 = vmatprep.subr.bf16.mxu0 0
    %1259 = vmatpush1.bf16.msra.mxu0 %v476
    %1260 = vmatprep.subr.bf16.mxu0 0
    %1261 = vmatpush2.bf16.msra.mxu0 0
    %1262 = vmatprep.subr.bf16.mxu0 0
    %1263 = vmatpush2.bf16.msra.mxu0 0
    %1264 = vmatprep.subr.bf16.mxu0 0
    %1265 = vmatpush2.bf16.msra.mxu0 0
    %1266 = vmatprep.subr.bf16.mxu0 0
    %1267 = vmatpush2.bf16.msra.mxu0 0
    %1268 = vmatprep.subr.bf16.mxu0 0
    %1269 = vmatpush2.bf16.msra.mxu0 0
    %1270 = vmatprep.subr.bf16.mxu0 0
    %1271 = vmatpush2.bf16.msra.mxu0 0
    %1272 = vmatprep.subr.bf16.mxu0 0
    %1273 = vmatpush2.bf16.msra.mxu0 0
    %1274 = vmatprep.subr.bf16.mxu0 0
    %1275 = vmatpush2.bf16.msra.mxu0 0
    %1276 = vmatprep.mubr.bf16.mxu0 0
    %1277 = vmatmul.mubr.bf16.gmra.mxu0 %v1201
    %v1278 = vpop.f32.mrf.mxu0
    %v1279 = vadd.f32 %v358, %v1278
    %v1280 = vpop.f32.mrf.mxu0
    %v1281 = vpop.f32.mrf.mxu0
    %v1282 = vpop.f32.mrf.mxu0
    %1283 = vdwg.mxu0
    %v1286 = vrot.slane %v1238, 4
    %v1287 = vrot.slane %v1240, 4
    %v1290 = vadd.f32 %v187, %v1286
    %v1291 = vadd.f32 %v189, %v1287
    %v1292 = vxor.u32 %v1290, 2147483648
    %v1293 = vxor.u32 %v1291, 2147483648
    %v1294 = vmul.f32 %v1292, 1.442695
    %v1295 = vpow.pop %v1294
    %v1296 = vmul.f32 %v1293, 1.442695
    %v1297 = vpow.pop %v1296
    %v1298 = vadd.f32 %v1295, 1.0
    %v1299 = vadd.f32 %v1297, 1.0
    %v1300 = vrcp.pop %v1298
    %v1301 = vmul.f32 1.0, %v1300
    %v1302 = vrcp.pop %v1299
    %v1303 = vmul.f32 1.0, %v1302
    %v1305 = vrot.slane %v1279, 4
    %v1307 = vmul.f32 %v1301, %v1305
    %v1308 = vadd.f32 %v264, %v1307
    %v1309 = vtanh.pop %v1308
    %v1310 = vsub.f32 1.0, %v1303
    %v1311 = vmul.f32 %v1310, %v1309
    %v1313 = vrot.slane %v1198, 6
    %v1315 = vmul.f32 %v1303, %v1313
    %v1316 = vadd.f32 %v1311, %v1315
    %v1317 = vpack.c.bf16 %v1316, %v1316
    %v1319 = vrot.slane %v1317, 2
    %1321 = vmatprep.subr.bf16.mxu0 %v496
    %1322 = vmatpush1.bf16.msra.mxu0 %v495
    %1323 = vmatprep.subr.bf16.mxu0 %v493
    %1324 = vmatpush1.bf16.msra.mxu0 %v492
    %1325 = vmatprep.subr.bf16.mxu0 %v490
    %1326 = vmatpush1.bf16.msra.mxu0 %v489
    %1327 = vmatprep.subr.bf16.mxu0 %v487
    %1328 = vmatpush1.bf16.msra.mxu0 %v486
    %1329 = vmatprep.subr.bf16.mxu0 %v484
    %1330 = vmatpush1.bf16.msra.mxu0 %v483
    %1331 = vmatprep.subr.bf16.mxu0 %v481
    %1332 = vmatpush1.bf16.msra.mxu0 %v480
    %1333 = vmatprep.subr.bf16.mxu0 %v478
    %1334 = vmatpush1.bf16.msra.mxu0 %v477
    %1335 = vmatprep.subr.bf16.mxu0 %v475
    %1336 = vmatpush1.bf16.msra.mxu0 %v474
    %1337 = vmatprep.subr.bf16.mxu0 0
    %1338 = vmatpush2.bf16.msra.mxu0 0
    %1339 = vmatprep.subr.bf16.mxu0 0
    %1340 = vmatpush2.bf16.msra.mxu0 0
    %1341 = vmatprep.subr.bf16.mxu0 0
    %1342 = vmatpush2.bf16.msra.mxu0 0
    %1343 = vmatprep.subr.bf16.mxu0 0
    %1344 = vmatpush2.bf16.msra.mxu0 0
    %1345 = vmatprep.subr.bf16.mxu0 0
    %1346 = vmatpush2.bf16.msra.mxu0 0
    %1347 = vmatprep.subr.bf16.mxu0 0
    %1348 = vmatpush2.bf16.msra.mxu0 0
    %1349 = vmatprep.subr.bf16.mxu0 0
    %1350 = vmatpush2.bf16.msra.mxu0 0
    %1351 = vmatprep.subr.bf16.mxu0 0
    %1352 = vmatpush2.bf16.msra.mxu0 0
    %1353 = vmatprep.mubr.bf16.mxu0 0
    %1354 = vmatmul.mubr.bf16.gmra.mxu0 %v1319
    %v1355 = vpop.f32.mrf.mxu0
    %v1356 = vadd.f32 %v350, %v1355
    %v1357 = vpop.f32.mrf.mxu0
    %v1358 = vadd.f32 %v354, %v1357
    %v1359 = vpop.f32.mrf.mxu0
    %v1360 = vpop.f32.mrf.mxu0
    %1361 = vdwg.mxu0
    %1362 = vmatprep.subr.bf16.mxu0 0
    %1363 = vmatpush1.bf16.msra.mxu0 %v497
    %1364 = vmatprep.subr.bf16.mxu0 0
    %1365 = vmatpush1.bf16.msra.mxu0 %v494
    %1366 = vmatprep.subr.bf16.mxu0 0
    %1367 = vmatpush1.bf16.msra.mxu0 %v491
    %1368 = vmatprep.subr.bf16.mxu0 0
    %1369 = vmatpush1.bf16.msra.mxu0 %v488
    %1370 = vmatprep.subr.bf16.mxu0 0
    %1371 = vmatpush1.bf16.msra.mxu0 %v485
    %1372 = vmatprep.subr.bf16.mxu0 0
    %1373 = vmatpush1.bf16.msra.mxu0 %v482
    %1374 = vmatprep.subr.bf16.mxu0 0
    %1375 = vmatpush1.bf16.msra.mxu0 %v479
    %1376 = vmatprep.subr.bf16.mxu0 0
    %1377 = vmatpush1.bf16.msra.mxu0 %v476
    %1378 = vmatprep.subr.bf16.mxu0 0
    %1379 = vmatpush2.bf16.msra.mxu0 0
    %1380 = vmatprep.subr.bf16.mxu0 0
    %1381 = vmatpush2.bf16.msra.mxu0 0
    %1382 = vmatprep.subr.bf16.mxu0 0
    %1383 = vmatpush2.bf16.msra.mxu0 0
    %1384 = vmatprep.subr.bf16.mxu0 0
    %1385 = vmatpush2.bf16.msra.mxu0 0
    %1386 = vmatprep.subr.bf16.mxu0 0
    %1387 = vmatpush2.bf16.msra.mxu0 0
    %1388 = vmatprep.subr.bf16.mxu0 0
    %1389 = vmatpush2.bf16.msra.mxu0 0
    %1390 = vmatprep.subr.bf16.mxu0 0
    %1391 = vmatpush2.bf16.msra.mxu0 0
    %1392 = vmatprep.subr.bf16.mxu0 0
    %1393 = vmatpush2.bf16.msra.mxu0 0
    %1394 = vmatprep.mubr.bf16.mxu0 0
    %1395 = vmatmul.mubr.bf16.gmra.mxu0 %v1319
    %v1396 = vpop.f32.mrf.mxu0
    %v1397 = vadd.f32 %v358, %v1396
    %v1398 = vpop.f32.mrf.mxu0
    %v1399 = vpop.f32.mrf.mxu0
    %v1400 = vpop.f32.mrf.mxu0
    %1401 = vdwg.mxu0
    %v1404 = vrot.slane %v1356, 2
    %v1405 = vrot.slane %v1358, 2
    %v1408 = vadd.f32 %v187, %v1404
    %v1409 = vadd.f32 %v189, %v1405
    %v1410 = vxor.u32 %v1408, 2147483648
    %v1411 = vxor.u32 %v1409, 2147483648
    %v1412 = vmul.f32 %v1410, 1.442695
    %v1413 = vpow.pop %v1412
    %v1414 = vmul.f32 %v1411, 1.442695
    %v1415 = vpow.pop %v1414
    %v1416 = vadd.f32 %v1413, 1.0
    %v1417 = vadd.f32 %v1415, 1.0
    %v1418 = vrcp.pop %v1416
    %v1419 = vmul.f32 1.0, %v1418
    %v1420 = vrcp.pop %v1417
    %v1421 = vmul.f32 1.0, %v1420
    %v1423 = vrot.slane %v1397, 2
    %v1425 = vmul.f32 %v1419, %v1423
    %v1426 = vadd.f32 %v264, %v1425
    %v1427 = vtanh.pop %v1426
    %v1428 = vsub.f32 1.0, %v1421
    %v1429 = vmul.f32 %v1428, %v1427
    %v1431 = vrot.slane %v1316, 6
    %v1433 = vmul.f32 %v1421, %v1431
    %v1434 = vadd.f32 %v1429, %v1433
    %v1435 = vld [vmem:[%s7] sm:$0x7]
    %v1437 = vlaneseq
    %v1438 = vshrl.u32 %v1437, 7
    %v1439 = vsub.s32 0, %v1438
    %v1440 = vrot.slane %v1435, %v1439
    %v1441 = vlaneseq
    %v1442 = vshrl.u32 %v1441, 7
    %v1443 = vsub.s32 1, %v1442
    %v1444 = vrot.slane %v1435, %v1443
    %v1445 = vlaneseq
    %v1446 = vshrl.u32 %v1445, 7
    %v1447 = vsub.s32 2, %v1446
    %v1448 = vrot.slane %v1435, %v1447
    %v1452 = vld [vmem:[#allocation2] sm:$0xff]
    %v1453 = vld [vmem:[#allocation2 + $0x8] sm:$0xf]
    %v1454 = vld [vmem:[#allocation2 + $0xc] sm:$0xff]
    %v1455 = vld [vmem:[#allocation2 + $0x14] sm:$0xf]
    %v1456 = vld [vmem:[#allocation2 + $0x18] sm:$0xff]
    %v1457 = vld [vmem:[#allocation2 + $0x20] sm:$0xf]
    %v1458 = vld [vmem:[#allocation2 + $0x24] sm:$0xff]
    %v1459 = vld [vmem:[#allocation2 + $0x2c] sm:$0xf]
    %v1460 = vld [vmem:[#allocation2 + $0x30] sm:$0xff]
    %v1461 = vld [vmem:[#allocation2 + $0x38] sm:$0xf]
    %v1462 = vld [vmem:[#allocation2 + $0x3c] sm:$0xff]
    %v1463 = vld [vmem:[#allocation2 + $0x44] sm:$0xf]
    %v1464 = vld [vmem:[#allocation2 + $0x48] sm:$0xff]
    %v1465 = vld [vmem:[#allocation2 + $0x50] sm:$0xf]
    %v1466 = vld [vmem:[#allocation2 + $0x54] sm:$0xff]
    %v1467 = vld [vmem:[#allocation2 + $0x5c] sm:$0xf]
    %v1468 = vld [vmem:[#allocation2 + $0x60] sm:$0xff]
    %v1469 = vld [vmem:[#allocation2 + $0x68] sm:$0xf]
    %v1470 = vld [vmem:[#allocation2 + $0x6c] sm:$0xff]
    %v1471 = vld [vmem:[#allocation2 + $0x74] sm:$0xf]
    %v1472 = vld [vmem:[#allocation2 + $0x78] sm:$0xff]
    %v1473 = vld [vmem:[#allocation2 + $0x80] sm:$0xf]
    %v1474 = vld [vmem:[#allocation2 + $0x84] sm:$0xff]
    %v1475 = vld [vmem:[#allocation2 + $0x8c] sm:$0xf]
    %v1476 = vld [vmem:[#allocation2 + $0x90] sm:$0xff]
    %v1477 = vld [vmem:[#allocation2 + $0x98] sm:$0xf]
    %v1478 = vld [vmem:[#allocation2 + $0x9c] sm:$0xff]
    %v1479 = vld [vmem:[#allocation2 + $0xa4] sm:$0xf]
    %v1480 = vld [vmem:[#allocation2 + $0xa8] sm:$0xff]
    %v1481 = vld [vmem:[#allocation2 + $0xb0] sm:$0xf]
    %v1482 = vld [vmem:[#allocation2 + $0xb4] sm:$0xff]
    %v1483 = vld [vmem:[#allocation2 + $0xbc] sm:$0xf]
    %v1516 = vunpack.c.l.b16 %v1452
    %v1517 = vunpack.c.h.b16 %v1452
    %v1518 = vunpack.c.l.b16 %v1453
    %v1519 = vunpack.c.l.b16 %v1454
    %v1520 = vunpack.c.h.b16 %v1454
    %v1521 = vunpack.c.l.b16 %v1455
    %v1522 = vunpack.c.l.b16 %v1456
    %v1523 = vunpack.c.h.b16 %v1456
    %v1524 = vunpack.c.l.b16 %v1457
    %v1525 = vunpack.c.l.b16 %v1458
    %v1526 = vunpack.c.h.b16 %v1458
    %v1527 = vunpack.c.l.b16 %v1459
    %v1528 = vunpack.c.l.b16 %v1460
    %v1529 = vunpack.c.h.b16 %v1460
    %v1530 = vunpack.c.l.b16 %v1461
    %v1531 = vunpack.c.l.b16 %v1462
    %v1532 = vunpack.c.h.b16 %v1462
    %v1533 = vunpack.c.l.b16 %v1463
    %v1534 = vunpack.c.l.b16 %v1464
    %v1535 = vunpack.c.h.b16 %v1464
    %v1536 = vunpack.c.l.b16 %v1465
    %v1537 = vunpack.c.l.b16 %v1466
    %v1538 = vunpack.c.h.b16 %v1466
    %v1539 = vunpack.c.l.b16 %v1467
    %v1540 = vunpack.c.l.b16 %v1468
    %v1541 = vunpack.c.h.b16 %v1468
    %v1542 = vunpack.c.l.b16 %v1469
    %v1543 = vunpack.c.l.b16 %v1470
    %v1544 = vunpack.c.h.b16 %v1470
    %v1545 = vunpack.c.l.b16 %v1471
    %v1546 = vunpack.c.l.b16 %v1472
    %v1547 = vunpack.c.h.b16 %v1472
    %v1548 = vunpack.c.l.b16 %v1473
    %v1549 = vunpack.c.l.b16 %v1474
    %v1550 = vunpack.c.h.b16 %v1474
    %v1551 = vunpack.c.l.b16 %v1475
    %v1552 = vunpack.c.l.b16 %v1476
    %v1553 = vunpack.c.h.b16 %v1476
    %v1554 = vunpack.c.l.b16 %v1477
    %v1555 = vunpack.c.l.b16 %v1478
    %v1556 = vunpack.c.h.b16 %v1478
    %v1557 = vunpack.c.l.b16 %v1479
    %v1558 = vunpack.c.l.b16 %v1480
    %v1559 = vunpack.c.h.b16 %v1480
    %v1560 = vunpack.c.l.b16 %v1481
    %v1561 = vunpack.c.l.b16 %v1482
    %v1562 = vunpack.c.h.b16 %v1482
    %v1563 = vunpack.c.l.b16 %v1483
    %v1564 = vpack.c.b16 %v1519, %v1516
    %v1565 = vpack.c.b16 %v1520, %v1517
    %v1566 = vpack.c.b16 %v1521, %v1518
    %v1567 = vpack.c.b16 %v1525, %v1522
    %v1568 = vpack.c.b16 %v1526, %v1523
    %v1569 = vpack.c.b16 %v1527, %v1524
    %v1570 = vpack.c.b16 %v1531, %v1528
    %v1571 = vpack.c.b16 %v1532, %v1529
    %v1572 = vpack.c.b16 %v1533, %v1530
    %v1573 = vpack.c.b16 %v1537, %v1534
    %v1574 = vpack.c.b16 %v1538, %v1535
    %v1575 = vpack.c.b16 %v1539, %v1536
    %v1576 = vpack.c.b16 %v1543, %v1540
    %v1577 = vpack.c.b16 %v1544, %v1541
    %v1578 = vpack.c.b16 %v1545, %v1542
    %v1579 = vpack.c.b16 %v1549, %v1546
    %v1580 = vpack.c.b16 %v1550, %v1547
    %v1581 = vpack.c.b16 %v1551, %v1548
    %v1582 = vpack.c.b16 %v1555, %v1552
    %v1583 = vpack.c.b16 %v1556, %v1553
    %v1584 = vpack.c.b16 %v1557, %v1554
    %v1585 = vpack.c.b16 %v1561, %v1558
    %v1586 = vpack.c.b16 %v1562, %v1559
    %v1587 = vpack.c.b16 %v1563, %v1560
    %1612 = vmatprep.subr.bf16.mxu0 %v1586
    %1613 = vmatpush1.bf16.msra.mxu0 %v1585
    %1614 = vmatprep.subr.bf16.mxu0 %v1583
    %1615 = vmatpush1.bf16.msra.mxu0 %v1582
    %1616 = vmatprep.subr.bf16.mxu0 %v1580
    %1617 = vmatpush1.bf16.msra.mxu0 %v1579
    %1618 = vmatprep.subr.bf16.mxu0 %v1577
    %1619 = vmatpush1.bf16.msra.mxu0 %v1576
    %1620 = vmatprep.subr.bf16.mxu0 %v1574
    %1621 = vmatpush1.bf16.msra.mxu0 %v1573
    %1622 = vmatprep.subr.bf16.mxu0 %v1571
    %1623 = vmatpush1.bf16.msra.mxu0 %v1570
    %1624 = vmatprep.subr.bf16.mxu0 %v1568
    %1625 = vmatpush1.bf16.msra.mxu0 %v1567
    %1626 = vmatprep.subr.bf16.mxu0 %v1565
    %1627 = vmatpush1.bf16.msra.mxu0 %v1564
    %1628 = vmatprep.subr.bf16.mxu0 0
    %1629 = vmatpush2.bf16.msra.mxu0 0
    %1630 = vmatprep.subr.bf16.mxu0 0
    %1631 = vmatpush2.bf16.msra.mxu0 0
    %1632 = vmatprep.subr.bf16.mxu0 0
    %1633 = vmatpush2.bf16.msra.mxu0 0
    %1634 = vmatprep.subr.bf16.mxu0 0
    %1635 = vmatpush2.bf16.msra.mxu0 0
    %1636 = vmatprep.subr.bf16.mxu0 0
    %1637 = vmatpush2.bf16.msra.mxu0 0
    %1638 = vmatprep.subr.bf16.mxu0 0
    %1639 = vmatpush2.bf16.msra.mxu0 0
    %1640 = vmatprep.subr.bf16.mxu0 0
    %1641 = vmatpush2.bf16.msra.mxu0 0
    %1642 = vmatprep.subr.bf16.mxu0 0
    %1643 = vmatpush2.bf16.msra.mxu0 0
    %1644 = vmatprep.mubr.bf16.mxu0 0
    %1645 = vmatmul.mubr.bf16.gmra.mxu0 0
    %v1646 = vpop.f32.mrf.mxu0
    %v1647 = vadd.f32 %v1440, %v1646
    %v1648 = vpop.f32.mrf.mxu0
    %v1649 = vadd.f32 %v1444, %v1648
    %v1650 = vpop.f32.mrf.mxu0
    %v1651 = vpop.f32.mrf.mxu0
    %1652 = vdwg.mxu0
    %1653 = vmatprep.subr.bf16.mxu0 0
    %1654 = vmatpush1.bf16.msra.mxu0 %v1587
    %1655 = vmatprep.subr.bf16.mxu0 0
    %1656 = vmatpush1.bf16.msra.mxu0 %v1584
    %1657 = vmatprep.subr.bf16.mxu0 0
    %1658 = vmatpush1.bf16.msra.mxu0 %v1581
    %1659 = vmatprep.subr.bf16.mxu0 0
    %1660 = vmatpush1.bf16.msra.mxu0 %v1578
    %1661 = vmatprep.subr.bf16.mxu0 0
    %1662 = vmatpush1.bf16.msra.mxu0 %v1575
    %1663 = vmatprep.subr.bf16.mxu0 0
    %1664 = vmatpush1.bf16.msra.mxu0 %v1572
    %1665 = vmatprep.subr.bf16.mxu0 0
    %1666 = vmatpush1.bf16.msra.mxu0 %v1569
    %1667 = vmatprep.subr.bf16.mxu0 0
    %1668 = vmatpush1.bf16.msra.mxu0 %v1566
    %1669 = vmatprep.subr.bf16.mxu0 0
    %1670 = vmatpush2.bf16.msra.mxu0 0
    %1671 = vmatprep.subr.bf16.mxu0 0
    %1672 = vmatpush2.bf16.msra.mxu0 0
    %1673 = vmatprep.subr.bf16.mxu0 0
    %1674 = vmatpush2.bf16.msra.mxu0 0
    %1675 = vmatprep.subr.bf16.mxu0 0
    %1676 = vmatpush2.bf16.msra.mxu0 0
    %1677 = vmatprep.subr.bf16.mxu0 0
    %1678 = vmatpush2.bf16.msra.mxu0 0
    %1679 = vmatprep.subr.bf16.mxu0 0
    %1680 = vmatpush2.bf16.msra.mxu0 0
    %1681 = vmatprep.subr.bf16.mxu0 0
    %1682 = vmatpush2.bf16.msra.mxu0 0
    %1683 = vmatprep.subr.bf16.mxu0 0
    %1684 = vmatpush2.bf16.msra.mxu0 0
    %1685 = vmatprep.mubr.bf16.mxu0 0
    %1686 = vmatmul.mubr.bf16.gmra.mxu0 0
    %v1687 = vpop.f32.mrf.mxu0
    %v1688 = vadd.f32 %v1448, %v1687
    %v1689 = vpop.f32.mrf.mxu0
    %v1690 = vpop.f32.mrf.mxu0
    %v1691 = vpop.f32.mrf.mxu0
    %1692 = vdwg.mxu0
    %v1695 = vrot.slane %v1647, 4
    %v1696 = vrot.slane %v1649, 4
    %v1699 = vadd.f32 %v260, %v1695
    %v1700 = vadd.f32 %v335, %v1696
    %v1701 = vxor.u32 %v1699, 2147483648
    %v1702 = vxor.u32 %v1700, 2147483648
    %v1703 = vmul.f32 %v1701, 1.442695
    %v1704 = vpow.pop %v1703
    %v1705 = vmul.f32 %v1702, 1.442695
    %v1706 = vpow.pop %v1705
    %v1707 = vadd.f32 %v1704, 1.0
    %v1708 = vadd.f32 %v1706, 1.0
    %v1709 = vrcp.pop %v1707
    %v1710 = vmul.f32 1.0, %v1709
    %v1711 = vrcp.pop %v1708
    %v1712 = vmul.f32 1.0, %v1711
    %v1714 = vrot.slane %v1688, 4
    %v1716 = vmul.f32 %v1710, %v1714
    %v1717 = vadd.f32 %v337, %v1716
    %v1718 = vtanh.pop %v1717
    %v1719 = vsub.f32 1.0, %v1712
    %v1720 = vmul.f32 %v1719, %v1718
    %v1721 = vmul.f32 %v1712, 0.0
    %v1722 = vadd.f32 %v1720, %v1721
    %v1723 = vpack.c.bf16 %v1722, %v1722
    %v1725 = vrot.slane %v1723, 2
    %1727 = vmatprep.subr.bf16.mxu0 %v1586
    %1728 = vmatpush1.bf16.msra.mxu0 %v1585
    %1729 = vmatprep.subr.bf16.mxu0 %v1583
    %1730 = vmatpush1.bf16.msra.mxu0 %v1582
    %1731 = vmatprep.subr.bf16.mxu0 %v1580
    %1732 = vmatpush1.bf16.msra.mxu0 %v1579
    %1733 = vmatprep.subr.bf16.mxu0 %v1577
    %1734 = vmatpush1.bf16.msra.mxu0 %v1576
    %1735 = vmatprep.subr.bf16.mxu0 %v1574
    %1736 = vmatpush1.bf16.msra.mxu0 %v1573
    %1737 = vmatprep.subr.bf16.mxu0 %v1571
    %1738 = vmatpush1.bf16.msra.mxu0 %v1570
    %1739 = vmatprep.subr.bf16.mxu0 %v1568
    %1740 = vmatpush1.bf16.msra.mxu0 %v1567
    %1741 = vmatprep.subr.bf16.mxu0 %v1565
    %1742 = vmatpush1.bf16.msra.mxu0 %v1564
    %1743 = vmatprep.subr.bf16.mxu0 0
    %1744 = vmatpush2.bf16.msra.mxu0 0
    %1745 = vmatprep.subr.bf16.mxu0 0
    %1746 = vmatpush2.bf16.msra.mxu0 0
    %1747 = vmatprep.subr.bf16.mxu0 0
    %1748 = vmatpush2.bf16.msra.mxu0 0
    %1749 = vmatprep.subr.bf16.mxu0 0
    %1750 = vmatpush2.bf16.msra.mxu0 0
    %1751 = vmatprep.subr.bf16.mxu0 0
    %1752 = vmatpush2.bf16.msra.mxu0 0
    %1753 = vmatprep.subr.bf16.mxu0 0
    %1754 = vmatpush2.bf16.msra.mxu0 0
    %1755 = vmatprep.subr.bf16.mxu0 0
    %1756 = vmatpush2.bf16.msra.mxu0 0
    %1757 = vmatprep.subr.bf16.mxu0 0
    %1758 = vmatpush2.bf16.msra.mxu0 0
    %1759 = vmatprep.mubr.bf16.mxu0 0
    %1760 = vmatmul.mubr.bf16.gmra.mxu0 %v1725
    %v1761 = vpop.f32.mrf.mxu0
    %v1762 = vadd.f32 %v1440, %v1761
    %v1763 = vpop.f32.mrf.mxu0
    %v1764 = vadd.f32 %v1444, %v1763
    %v1765 = vpop.f32.mrf.mxu0
    %v1766 = vpop.f32.mrf.mxu0
    %1767 = vdwg.mxu0
    %1768 = vmatprep.subr.bf16.mxu0 0
    %1769 = vmatpush1.bf16.msra.mxu0 %v1587
    %1770 = vmatprep.subr.bf16.mxu0 0
    %1771 = vmatpush1.bf16.msra.mxu0 %v1584
    %1772 = vmatprep.subr.bf16.mxu0 0
    %1773 = vmatpush1.bf16.msra.mxu0 %v1581
    %1774 = vmatprep.subr.bf16.mxu0 0
    %1775 = vmatpush1.bf16.msra.mxu0 %v1578
    %1776 = vmatprep.subr.bf16.mxu0 0
    %1777 = vmatpush1.bf16.msra.mxu0 %v1575
    %1778 = vmatprep.subr.bf16.mxu0 0
    %1779 = vmatpush1.bf16.msra.mxu0 %v1572
    %1780 = vmatprep.subr.bf16.mxu0 0
    %1781 = vmatpush1.bf16.msra.mxu0 %v1569
    %1782 = vmatprep.subr.bf16.mxu0 0
    %1783 = vmatpush1.bf16.msra.mxu0 %v1566
    %1784 = vmatprep.subr.bf16.mxu0 0
    %1785 = vmatpush2.bf16.msra.mxu0 0
    %1786 = vmatprep.subr.bf16.mxu0 0
    %1787 = vmatpush2.bf16.msra.mxu0 0
    %1788 = vmatprep.subr.bf16.mxu0 0
    %1789 = vmatpush2.bf16.msra.mxu0 0
    %1790 = vmatprep.subr.bf16.mxu0 0
    %1791 = vmatpush2.bf16.msra.mxu0 0
    %1792 = vmatprep.subr.bf16.mxu0 0
    %1793 = vmatpush2.bf16.msra.mxu0 0
    %1794 = vmatprep.subr.bf16.mxu0 0
    %1795 = vmatpush2.bf16.msra.mxu0 0
    %1796 = vmatprep.subr.bf16.mxu0 0
    %1797 = vmatpush2.bf16.msra.mxu0 0
    %1798 = vmatprep.subr.bf16.mxu0 0
    %1799 = vmatpush2.bf16.msra.mxu0 0
    %1800 = vmatprep.mubr.bf16.mxu0 0
    %1801 = vmatmul.mubr.bf16.gmra.mxu0 %v1725
    %v1802 = vpop.f32.mrf.mxu0
    %v1803 = vadd.f32 %v1448, %v1802
    %v1804 = vpop.f32.mrf.mxu0
    %v1805 = vpop.f32.mrf.mxu0
    %v1806 = vpop.f32.mrf.mxu0
    %1807 = vdwg.mxu0
    %v1808 = vadd.f32 %v266, %v1762
    %v1809 = vadd.f32 %v341, %v1764
    %v1810 = vxor.u32 %v1808, 2147483648
    %v1811 = vxor.u32 %v1809, 2147483648
    %v1812 = vmul.f32 %v1810, 1.442695
    %v1813 = vpow.pop %v1812
    %v1814 = vmul.f32 %v1811, 1.442695
    %v1815 = vpow.pop %v1814
    %v1816 = vadd.f32 %v1813, 1.0
    %v1817 = vadd.f32 %v1815, 1.0
    %v1818 = vrcp.pop %v1816
    %v1819 = vmul.f32 1.0, %v1818
    %v1820 = vrcp.pop %v1817
    %v1821 = vmul.f32 1.0, %v1820
    %v1822 = vmul.f32 %v1819, %v1803
    %v1823 = vadd.f32 %v343, %v1822
    %v1824 = vtanh.pop %v1823
    %v1825 = vsub.f32 1.0, %v1821
    %v1826 = vmul.f32 %v1825, %v1824
    %v1828 = vrot.slane %v1722, 4
    %v1830 = vmul.f32 %v1821, %v1828
    %v1831 = vadd.f32 %v1826, %v1830
    %v1832 = vpack.c.bf16 %v1831, %v1831
    %1833 = vmatprep.subr.bf16.mxu0 %v1586
    %1834 = vmatpush1.bf16.msra.mxu0 %v1585
    %1835 = vmatprep.subr.bf16.mxu0 %v1583
    %1836 = vmatpush1.bf16.msra.mxu0 %v1582
    %1837 = vmatprep.subr.bf16.mxu0 %v1580
    %1838 = vmatpush1.bf16.msra.mxu0 %v1579
    %1839 = vmatprep.subr.bf16.mxu0 %v1577
    %1840 = vmatpush1.bf16.msra.mxu0 %v1576
    %1841 = vmatprep.subr.bf16.mxu0 %v1574
    %1842 = vmatpush1.bf16.msra.mxu0 %v1573
    %1843 = vmatprep.subr.bf16.mxu0 %v1571
    %1844 = vmatpush1.bf16.msra.mxu0 %v1570
    %1845 = vmatprep.subr.bf16.mxu0 %v1568
    %1846 = vmatpush1.bf16.msra.mxu0 %v1567
    %1847 = vmatprep.subr.bf16.mxu0 %v1565
    %1848 = vmatpush1.bf16.msra.mxu0 %v1564
    %1849 = vmatprep.subr.bf16.mxu0 0
    %1850 = vmatpush2.bf16.msra.mxu0 0
    %1851 = vmatprep.subr.bf16.mxu0 0
    %1852 = vmatpush2.bf16.msra.mxu0 0
    %1853 = vmatprep.subr.bf16.mxu0 0
    %1854 = vmatpush2.bf16.msra.mxu0 0
    %1855 = vmatprep.subr.bf16.mxu0 0
    %1856 = vmatpush2.bf16.msra.mxu0 0
    %1857 = vmatprep.subr.bf16.mxu0 0
    %1858 = vmatpush2.bf16.msra.mxu0 0
    %1859 = vmatprep.subr.bf16.mxu0 0
    %1860 = vmatpush2.bf16.msra.mxu0 0
    %1861 = vmatprep.subr.bf16.mxu0 0
    %1862 = vmatpush2.bf16.msra.mxu0 0
    %1863 = vmatprep.subr.bf16.mxu0 0
    %1864 = vmatpush2.bf16.msra.mxu0 0
    %1865 = vmatprep.mubr.bf16.mxu0 0
    %1866 = vmatmul.mubr.bf16.gmra.mxu0 %v1832
    %v1867 = vpop.f32.mrf.mxu0
    %v1868 = vadd.f32 %v1440, %v1867
    %v1869 = vpop.f32.mrf.mxu0
    %v1870 = vadd.f32 %v1444, %v1869
    %v1871 = vpop.f32.mrf.mxu0
    %v1872 = vpop.f32.mrf.mxu0
    %1873 = vdwg.mxu0
    %1874 = vmatprep.subr.bf16.mxu0 0
    %1875 = vmatpush1.bf16.msra.mxu0 %v1587
    %1876 = vmatprep.subr.bf16.mxu0 0
    %1877 = vmatpush1.bf16.msra.mxu0 %v1584
    %1878 = vmatprep.subr.bf16.mxu0 0
    %1879 = vmatpush1.bf16.msra.mxu0 %v1581
    %1880 = vmatprep.subr.bf16.mxu0 0
    %1881 = vmatpush1.bf16.msra.mxu0 %v1578
    %1882 = vmatprep.subr.bf16.mxu0 0
    %1883 = vmatpush1.bf16.msra.mxu0 %v1575
    %1884 = vmatprep.subr.bf16.mxu0 0
    %1885 = vmatpush1.bf16.msra.mxu0 %v1572
    %1886 = vmatprep.subr.bf16.mxu0 0
    %1887 = vmatpush1.bf16.msra.mxu0 %v1569
    %1888 = vmatprep.subr.bf16.mxu0 0
    %1889 = vmatpush1.bf16.msra.mxu0 %v1566
    %1890 = vmatprep.subr.bf16.mxu0 0
    %1891 = vmatpush2.bf16.msra.mxu0 0
    %1892 = vmatprep.subr.bf16.mxu0 0
    %1893 = vmatpush2.bf16.msra.mxu0 0
    %1894 = vmatprep.subr.bf16.mxu0 0
    %1895 = vmatpush2.bf16.msra.mxu0 0
    %1896 = vmatprep.subr.bf16.mxu0 0
    %1897 = vmatpush2.bf16.msra.mxu0 0
    %1898 = vmatprep.subr.bf16.mxu0 0
    %1899 = vmatpush2.bf16.msra.mxu0 0
    %1900 = vmatprep.subr.bf16.mxu0 0
    %1901 = vmatpush2.bf16.msra.mxu0 0
    %1902 = vmatprep.subr.bf16.mxu0 0
    %1903 = vmatpush2.bf16.msra.mxu0 0
    %1904 = vmatprep.subr.bf16.mxu0 0
    %1905 = vmatpush2.bf16.msra.mxu0 0
    %1906 = vmatprep.mubr.bf16.mxu0 0
    %1907 = vmatmul.mubr.bf16.gmra.mxu0 %v1832
    %v1908 = vpop.f32.mrf.mxu0
    %v1909 = vadd.f32 %v1448, %v1908
    %v1910 = vpop.f32.mrf.mxu0
    %v1911 = vpop.f32.mrf.mxu0
    %v1912 = vpop.f32.mrf.mxu0
    %1913 = vdwg.mxu0
    %v1916 = vrot.slane %v1868, 4
    %v1917 = vrot.slane %v1870, 4
    %v1920 = vadd.f32 %v266, %v1916
    %v1921 = vadd.f32 %v341, %v1917
    %v1922 = vxor.u32 %v1920, 2147483648
    %v1923 = vxor.u32 %v1921, 2147483648
    %v1924 = vmul.f32 %v1922, 1.442695
    %v1925 = vpow.pop %v1924
    %v1926 = vmul.f32 %v1923, 1.442695
    %v1927 = vpow.pop %v1926
    %v1928 = vadd.f32 %v1925, 1.0
    %v1929 = vadd.f32 %v1927, 1.0
    %v1930 = vrcp.pop %v1928
    %v1931 = vmul.f32 1.0, %v1930
    %v1932 = vrcp.pop %v1929
    %v1933 = vmul.f32 1.0, %v1932
    %v1935 = vrot.slane %v1909, 4
    %v1937 = vmul.f32 %v1931, %v1935
    %v1938 = vadd.f32 %v343, %v1937
    %v1939 = vtanh.pop %v1938
    %v1940 = vsub.f32 1.0, %v1933
    %v1941 = vmul.f32 %v1940, %v1939
    %v1943 = vrot.slane %v1831, 4
    %v1945 = vmul.f32 %v1933, %v1943
    %v1946 = vadd.f32 %v1941, %v1945
    %v1947 = vld [vmem:[%s1] sm:$0x3]
    %v1949 = vrot.slane %v1946, 6
    %v1952 = vrot.slane %v1947, 2
    %v1954 = vpack.c.bf16 %v1434, %v1434
    %v1955 = vpack.c.bf16 %v1949, %v1949
    %v1956 = vpack.c.bf16 %v1946, %v1946
    %v1957 = vpack.c.bf16 %v1952, %v1952
    %v1958 = vld [vmem:[%s8] sm:$0xf]
    %v1959 = vld [vmem:[%s8 + $0x4] sm:$0xf]
    %v1960 = vld [vmem:[%s8 + $0x8] sm:$0xf]
    %v1961 = vld [vmem:[%s8 + $0xc] sm:$0xf]
    %v1962 = vld [vmem:[%s8 + $0x10] sm:$0xf]
    %v1963 = vld [vmem:[%s8 + $0x14] sm:$0xf]
    %v1964 = vld [vmem:[%s8 + $0x18] sm:$0xf]
    %v1965 = vld [vmem:[%s8 + $0x1c] sm:$0xf]
    %v1966 = vld [vmem:[%s8 + $0x20] sm:$0xf]
    %v1967 = vld [vmem:[%s8 + $0x24] sm:$0xf]
    %v1968 = vld [vmem:[%s8 + $0x28] sm:$0xf]
    %v1969 = vld [vmem:[%s8 + $0x2c] sm:$0xf]
    %v1970 = vld [vmem:[%s8 + $0x30] sm:$0xf]
    %v1971 = vld [vmem:[%s8 + $0x34] sm:$0xf]
    %v1972 = vld [vmem:[%s8 + $0x38] sm:$0xf]
    %v1973 = vld [vmem:[%s8 + $0x3c] sm:$0xf]
    %v1974 = vld [vmem:[%s8 + $0x40] sm:$0xf]
    %v1975 = vld [vmem:[%s8 + $0x44] sm:$0xf]
    %v1976 = vld [vmem:[%s8 + $0x48] sm:$0xf]
    %v1977 = vld [vmem:[%s8 + $0x4c] sm:$0xf]
    %v1978 = vld [vmem:[%s8 + $0x50] sm:$0xf]
    %v1979 = vld [vmem:[%s8 + $0x54] sm:$0xf]
    %v1980 = vld [vmem:[%s8 + $0x58] sm:$0xf]
    %v1981 = vld [vmem:[%s8 + $0x5c] sm:$0xf]
    %v1982 = vld [vmem:[%s8 + $0x60] sm:$0xf]
    %v1983 = vld [vmem:[%s8 + $0x64] sm:$0xf]
    %v1984 = vld [vmem:[%s8 + $0x68] sm:$0xf]
    %v1985 = vld [vmem:[%s8 + $0x6c] sm:$0xf]
    %v1986 = vld [vmem:[%s8 + $0x70] sm:$0xf]
    %v1987 = vld [vmem:[%s8 + $0x74] sm:$0xf]
    %v1988 = vld [vmem:[%s8 + $0x78] sm:$0xf]
    %v1989 = vld [vmem:[%s8 + $0x7c] sm:$0xf]
    %v1990 = vld [vmem:[%s8 + $0x80] sm:$0xf]
    %v1991 = vld [vmem:[%s8 + $0x84] sm:$0xf]
    %v1992 = vld [vmem:[%s8 + $0x88] sm:$0xf]
    %v1993 = vld [vmem:[%s8 + $0x8c] sm:$0xf]
    %v1994 = vld [vmem:[%s8 + $0x90] sm:$0xf]
    %v1995 = vld [vmem:[%s8 + $0x94] sm:$0xf]
    %v1996 = vld [vmem:[%s8 + $0x98] sm:$0xf]
    %v1997 = vld [vmem:[%s8 + $0x9c] sm:$0xf]
    %v1998 = vld [vmem:[%s8 + $0xa0] sm:$0xf]
    %v1999 = vld [vmem:[%s8 + $0xa4] sm:$0xf]
    %v2000 = vld [vmem:[%s8 + $0xa8] sm:$0xf]
    %v2001 = vld [vmem:[%s8 + $0xac] sm:$0xf]
    %v2002 = vld [vmem:[%s8 + $0xb0] sm:$0xf]
    %v2003 = vld [vmem:[%s8 + $0xb4] sm:$0xf]
    %v2004 = vld [vmem:[%s8 + $0xb8] sm:$0xf]
    %v2005 = vld [vmem:[%s8 + $0xbc] sm:$0xf]
    %v2006 = vld [vmem:[%s8 + $0xc0] sm:$0xf]
    %v2007 = vld [vmem:[%s8 + $0xc4] sm:$0xf]
    %v2008 = vld [vmem:[%s8 + $0xc8] sm:$0xf]
    %v2009 = vld [vmem:[%s8 + $0xcc] sm:$0xf]
    %v2010 = vld [vmem:[%s8 + $0xd0] sm:$0xf]
    %v2011 = vld [vmem:[%s8 + $0xd4] sm:$0xf]
    %v2012 = vld [vmem:[%s8 + $0xd8] sm:$0xf]
    %v2013 = vld [vmem:[%s8 + $0xdc] sm:$0xf]
    %v2014 = vld [vmem:[%s8 + $0xe0] sm:$0xf]
    %v2015 = vld [vmem:[%s8 + $0xe4] sm:$0xf]
    %v2016 = vld [vmem:[%s8 + $0xe8] sm:$0xf]
    %v2017 = vld [vmem:[%s8 + $0xec] sm:$0xf]
    %v2018 = vld [vmem:[%s8 + $0xf0] sm:$0xf]
    %v2019 = vld [vmem:[%s8 + $0xf4] sm:$0xf]
    %v2020 = vld [vmem:[%s8 + $0xf8] sm:$0xf]
    %v2021 = vld [vmem:[%s8 + $0xfc] sm:$0xf]
    %v2022 = vld [vmem:[%s9] sm:$0x1]
    %v2024 = vlaneseq
    %v2025 = vshrl.u32 %v2024, 7
    %v2026 = vsub.s32 0, %v2025
    %v2027 = vrot.slane %v2022, %v2026
    %v2033 = vrot.slane %v1954, 3
    %v2034 = vrot.slane %v1955, 3
    %v2035 = vrot.slane %v1956, 3
    %v2036 = vrot.slane %v1957, 3
    %v2105 = vunpack.c.l.b16 %v1958
    %v2106 = vunpack.c.l.b16 %v1959
    %v2107 = vunpack.c.l.b16 %v1960
    %v2108 = vunpack.c.l.b16 %v1961
    %v2109 = vunpack.c.l.b16 %v1962
    %v2110 = vunpack.c.l.b16 %v1963
    %v2111 = vunpack.c.l.b16 %v1964
    %v2112 = vunpack.c.l.b16 %v1965
    %v2113 = vunpack.c.l.b16 %v1966
    %v2114 = vunpack.c.l.b16 %v1967
    %v2115 = vunpack.c.l.b16 %v1968
    %v2116 = vunpack.c.l.b16 %v1969
    %v2117 = vunpack.c.l.b16 %v1970
    %v2118 = vunpack.c.l.b16 %v1971
    %v2119 = vunpack.c.l.b16 %v1972
    %v2120 = vunpack.c.l.b16 %v1973
    %v2121 = vunpack.c.l.b16 %v1974
    %v2122 = vunpack.c.l.b16 %v1975
    %v2123 = vunpack.c.l.b16 %v1976
    %v2124 = vunpack.c.l.b16 %v1977
    %v2125 = vunpack.c.l.b16 %v1978
    %v2126 = vunpack.c.l.b16 %v1979
    %v2127 = vunpack.c.l.b16 %v1980
    %v2128 = vunpack.c.l.b16 %v1981
    %v2129 = vunpack.c.l.b16 %v1982
    %v2130 = vunpack.c.l.b16 %v1983
    %v2131 = vunpack.c.l.b16 %v1984
    %v2132 = vunpack.c.l.b16 %v1985
    %v2133 = vunpack.c.l.b16 %v1986
    %v2134 = vunpack.c.l.b16 %v1987
    %v2135 = vunpack.c.l.b16 %v1988
    %v2136 = vunpack.c.l.b16 %v1989
    %v2137 = vunpack.c.l.b16 %v1990
    %v2138 = vunpack.c.l.b16 %v1991
    %v2139 = vunpack.c.l.b16 %v1992
    %v2140 = vunpack.c.l.b16 %v1993
    %v2141 = vunpack.c.l.b16 %v1994
    %v2142 = vunpack.c.l.b16 %v1995
    %v2143 = vunpack.c.l.b16 %v1996
    %v2144 = vunpack.c.l.b16 %v1997
    %v2145 = vunpack.c.l.b16 %v1998
    %v2146 = vunpack.c.l.b16 %v1999
    %v2147 = vunpack.c.l.b16 %v2000
    %v2148 = vunpack.c.l.b16 %v2001
    %v2149 = vunpack.c.l.b16 %v2002
    %v2150 = vunpack.c.l.b16 %v2003
    %v2151 = vunpack.c.l.b16 %v2004
    %v2152 = vunpack.c.l.b16 %v2005
    %v2153 = vunpack.c.l.b16 %v2006
    %v2154 = vunpack.c.l.b16 %v2007
    %v2155 = vunpack.c.l.b16 %v2008
    %v2156 = vunpack.c.l.b16 %v2009
    %v2157 = vunpack.c.l.b16 %v2010
    %v2158 = vunpack.c.l.b16 %v2011
    %v2159 = vunpack.c.l.b16 %v2012
    %v2160 = vunpack.c.l.b16 %v2013
    %v2161 = vunpack.c.l.b16 %v2014
    %v2162 = vunpack.c.l.b16 %v2015
    %v2163 = vunpack.c.l.b16 %v2016
    %v2164 = vunpack.c.l.b16 %v2017
    %v2165 = vunpack.c.l.b16 %v2018
    %v2166 = vunpack.c.l.b16 %v2019
    %v2167 = vunpack.c.l.b16 %v2020
    %v2168 = vunpack.c.l.b16 %v2021
    %v2169 = vpack.c.b16 %v2106, %v2105
    %v2170 = vpack.c.b16 %v2108, %v2107
    %v2171 = vpack.c.b16 %v2110, %v2109
    %v2172 = vpack.c.b16 %v2112, %v2111
    %v2173 = vpack.c.b16 %v2114, %v2113
    %v2174 = vpack.c.b16 %v2116, %v2115
    %v2175 = vpack.c.b16 %v2118, %v2117
    %v2176 = vpack.c.b16 %v2120, %v2119
    %v2177 = vpack.c.b16 %v2122, %v2121
    %v2178 = vpack.c.b16 %v2124, %v2123
    %v2179 = vpack.c.b16 %v2126, %v2125
    %v2180 = vpack.c.b16 %v2128, %v2127
    %v2181 = vpack.c.b16 %v2130, %v2129
    %v2182 = vpack.c.b16 %v2132, %v2131
    %v2183 = vpack.c.b16 %v2134, %v2133
    %v2184 = vpack.c.b16 %v2136, %v2135
    %v2185 = vpack.c.b16 %v2138, %v2137
    %v2186 = vpack.c.b16 %v2140, %v2139
    %v2187 = vpack.c.b16 %v2142, %v2141
    %v2188 = vpack.c.b16 %v2144, %v2143
    %v2189 = vpack.c.b16 %v2146, %v2145
    %v2190 = vpack.c.b16 %v2148, %v2147
    %v2191 = vpack.c.b16 %v2150, %v2149
    %v2192 = vpack.c.b16 %v2152, %v2151
    %v2193 = vpack.c.b16 %v2154, %v2153
    %v2194 = vpack.c.b16 %v2156, %v2155
    %v2195 = vpack.c.b16 %v2158, %v2157
    %v2196 = vpack.c.b16 %v2160, %v2159
    %v2197 = vpack.c.b16 %v2162, %v2161
    %v2198 = vpack.c.b16 %v2164, %v2163
    %v2199 = vpack.c.b16 %v2166, %v2165
    %v2200 = vpack.c.b16 %v2168, %v2167
    %2233 = vmatprep.subr.bf16.mxu0 0
    %2234 = vmatpush1.bf16.msra.mxu0 %v2176
    %2235 = vmatprep.subr.bf16.mxu0 0
    %2236 = vmatpush1.bf16.msra.mxu0 %v2175
    %2237 = vmatprep.subr.bf16.mxu0 0
    %2238 = vmatpush1.bf16.msra.mxu0 %v2174
    %2239 = vmatprep.subr.bf16.mxu0 0
    %2240 = vmatpush1.bf16.msra.mxu0 %v2173
    %2241 = vmatprep.subr.bf16.mxu0 0
    %2242 = vmatpush1.bf16.msra.mxu0 %v2172
    %2243 = vmatprep.subr.bf16.mxu0 0
    %2244 = vmatpush1.bf16.msra.mxu0 %v2171
    %2245 = vmatprep.subr.bf16.mxu0 0
    %2246 = vmatpush1.bf16.msra.mxu0 %v2170
    %2247 = vmatprep.subr.bf16.mxu0 0
    %2248 = vmatpush1.bf16.msra.mxu0 %v2169
    %2249 = vmatprep.subr.bf16.mxu0 0
    %2250 = vmatpush2.bf16.msra.mxu0 %v2184
    %2251 = vmatprep.subr.bf16.mxu0 0
    %2252 = vmatpush2.bf16.msra.mxu0 %v2183
    %2253 = vmatprep.subr.bf16.mxu0 0
    %2254 = vmatpush2.bf16.msra.mxu0 %v2182
    %2255 = vmatprep.subr.bf16.mxu0 0
    %2256 = vmatpush2.bf16.msra.mxu0 %v2181
    %2257 = vmatprep.subr.bf16.mxu0 0
    %2258 = vmatpush2.bf16.msra.mxu0 %v2180
    %2259 = vmatprep.subr.bf16.mxu0 0
    %2260 = vmatpush2.bf16.msra.mxu0 %v2179
    %2261 = vmatprep.subr.bf16.mxu0 0
    %2262 = vmatpush2.bf16.msra.mxu0 %v2178
    %2263 = vmatprep.subr.bf16.mxu0 0
    %2264 = vmatpush2.bf16.msra.mxu0 %v2177
    %2265 = vmatprep.mubr.bf16.mxu0 %v2034
    %2266 = vmatmul.mubr.bf16.gmra.mxu0 %v2033
    %v2267 = vpop.f32.mrf.mxu0
    %v2268 = vadd.f32 %v2027, %v2267
    %v2269 = vpop.f32.mrf.mxu0
    %v2270 = vpop.f32.mrf.mxu0
    %v2271 = vpop.f32.mrf.mxu0
    %2272 = vdwg.mxu0
    %2273 = vmatprep.subr.bf16.mxu0 0
    %2274 = vmatpush1.bf16.msra.mxu0 %v2192
    %2275 = vmatprep.subr.bf16.mxu0 0
    %2276 = vmatpush1.bf16.msra.mxu0 %v2191
    %2277 = vmatprep.subr.bf16.mxu0 0
    %2278 = vmatpush1.bf16.msra.mxu0 %v2190
    %2279 = vmatprep.subr.bf16.mxu0 0
    %2280 = vmatpush1.bf16.msra.mxu0 %v2189
    %2281 = vmatprep.subr.bf16.mxu0 0
    %2282 = vmatpush1.bf16.msra.mxu0 %v2188
    %2283 = vmatprep.subr.bf16.mxu0 0
    %2284 = vmatpush1.bf16.msra.mxu0 %v2187
    %2285 = vmatprep.subr.bf16.mxu0 0
    %2286 = vmatpush1.bf16.msra.mxu0 %v2186
    %2287 = vmatprep.subr.bf16.mxu0 0
    %2288 = vmatpush1.bf16.msra.mxu0 %v2185
    %2289 = vmatprep.subr.bf16.mxu0 0
    %2290 = vmatpush2.bf16.msra.mxu0 %v2200
    %2291 = vmatprep.subr.bf16.mxu0 0
    %2292 = vmatpush2.bf16.msra.mxu0 %v2199
    %2293 = vmatprep.subr.bf16.mxu0 0
    %2294 = vmatpush2.bf16.msra.mxu0 %v2198
    %2295 = vmatprep.subr.bf16.mxu0 0
    %2296 = vmatpush2.bf16.msra.mxu0 %v2197
    %2297 = vmatprep.subr.bf16.mxu0 0
    %2298 = vmatpush2.bf16.msra.mxu0 %v2196
    %2299 = vmatprep.subr.bf16.mxu0 0
    %2300 = vmatpush2.bf16.msra.mxu0 %v2195
    %2301 = vmatprep.subr.bf16.mxu0 0
    %2302 = vmatpush2.bf16.msra.mxu0 %v2194
    %2303 = vmatprep.subr.bf16.mxu0 0
    %2304 = vmatpush2.bf16.msra.mxu0 %v2193
    %2305 = vmatprep.mubr.bf16.mxu0 %v2036
    %2306 = vmatmul.mubr.bf16.gmra.mxu0 %v2035
    %v2307 = vpop.f32.mrf.mxu0
    %v2308 = vadd.f32 %v2268, %v2307
    %v2309 = vpop.f32.mrf.mxu0
    %v2310 = vpop.f32.mrf.mxu0
    %v2311 = vpop.f32.mrf.mxu0
    %2312 = vdwg.mxu0
    %vm2313 = vcmask 123904
    %2314 = vst.msk [vmem:[#allocation5] sm:$0x3] %vm2313, %v2308
    // Predicated region
    $region46: #{tpu_custom_call.1} parent=1 // pred_check
      _
    $region47: #{tpu_custom_call.1} parent=1 // pred_check_branch
      %2316 = sbr.rel (0) target = $region49
    $region48: #{tpu_custom_call.1} parent=1 // pred_region
      %s2318 = ssub.s32 32, 32
      %2319 = vsyncadd [#allocation4], %s2318
      %s2321 = sshll.u32 [#allocation5], 4
      %s2322 = int_to_ptr.vmem [resolvable:$true] %s2321
      %2324 = dma.vmem_to_hbm [thread:$0]  %s2322, 32, %s10, [#allocation4]
    $region49: #{tpu_custom_call.1} parent=1 // pred_fallthru
      _
    // Predicated region
    $region50: #{tpu_custom_call.1} parent=1 // pred_check
      _
    $region51: #{tpu_custom_call.1} parent=1 // pred_check_branch
      %2326 = sbr.rel (0) target = $region53
    $region52: #{tpu_custom_call.1} parent=1 // pred_region
      %2327 = dma.done [#allocation4], 32
    $region53: #{tpu_custom_call.1} parent=1 // pred_fallthru
      _
    %2328 = vsyncpa [#allocation3], 1
    %2329 = vsyncpa [#allocation4], 1

</llo_original>
